<compile_context>
chip_gen: v5e
topology: v5e:2x2
jax: 0.10.0
libtpu: 0.0.40
codegen_flags: <defaults>
</compile_context>

<pallas_src>
import functools

import jax
import jax.numpy as jnp
import numpy as np
from jax import lax
from jax.experimental import pallas as pl
from jax.experimental.pallas import tpu as pltpu


def _residual_block_kernel(x_ref, w1_ref, b1_ref, w2_ref, b2_ref, o_ref, *, W):
    # x_ref : (1, H*W, Cin)  f32  one image, rows = flattened (h, w)
    # w*_ref: (3, 3*Cin, Cout) bf16  BN-scale-folded weights, [dy, dx*Cin+ci, co]
    # b*_ref: (1, Cout)      f32  folded BN bias
    # o_ref : (1, H*W, Cout) f32
    HW, Cin = x_ref.shape[1], x_ref.shape[2]

    x0 = x_ref[0]                               # (H*W, Cin); also the shortcut.

    # Column-position masks for the dx = -1 / +1 taps (no W padding anywhere).
    # Built once, pre-broadcast to the slab shape, reused by both convs
    # (Cin == Cout for the identity shortcut).
    col = lax.broadcasted_iota(jnp.int32, (HW, 1), 0) % W
    has_left = jnp.broadcast_to(col > 0, (HW, Cin))        # column w-1 exists
    has_right = jnp.broadcast_to(col < (W - 1), (HW, Cin))  # column w+1 exists

    def conv3x3(a, w_ref):
        """3x3 'same' conv of an (H*W, C) slab with (3, 3*C, Cout) weights."""
        c = a.shape[1]
        zrow1 = jnp.zeros((1, c), a.dtype)
        # dx-shifted copies; invalid boundary columns masked to zero (VPU
        # select), cast to bf16 so the K = 3*C operand slab is assembled
        # directly in the MXU operand dtype.
        a_left = jnp.where(has_left,
                           jnp.concatenate([zrow1, a[:-1]], axis=0),
                           0.0).astype(jnp.bfloat16)
        a_mid = a.astype(jnp.bfloat16)
        a_right = jnp.where(has_right,
                            jnp.concatenate([a[1:], zrow1], axis=0),
                            0.0).astype(jnp.bfloat16)
        # Fuse the three dx taps into the contraction axis: K = 3*C.
        cat = jnp.concatenate([a_left, a_mid, a_right], axis=-1)
        # 1-row halo for the dy taps: constant zero row-blocks (no scratch,
        # nothing re-zeroed per grid step, everything sublane-aligned).
        zhalo = jnp.zeros((W, 3 * c), jnp.bfloat16)
        catp = jnp.concatenate([zhalo, cat, zhalo], axis=0)   # ((H+2)*W, 3*C)
        # dy taps = aligned row-offset slices; one MXU matmul per dy,
        # bf16 operands with f32 accumulation.
        acc = jnp.dot(catp[0:HW], w_ref[0], preferred_element_type=jnp.float32)
        for dy in (1, 2):
            acc = acc + jnp.dot(catp[dy * W:dy * W + HW], w_ref[dy],
                                preferred_element_type=jnp.float32)
        return acc                                            # (H*W, Cout) f32

    # conv1 + folded BN1 (scale already in the weights) + ReLU
    y1 = jnp.maximum(conv3x3(x0, w1_ref) + b1_ref[...], 0.0)
    # conv2 + folded BN2 + identity shortcut + final ReLU
    y2 = conv3x3(y1, w2_ref) + b2_ref[...] + x0
    o_ref[0] = jnp.maximum(y2, 0.0).astype(o_ref.dtype)


def _fused_residual_block(x_rows, w1f, b1, w2f, b2, *, W):
    """x_rows: (N, H*W, Cin) f32; w*f: (3, 3*C, Cout) bf16; b*: (1, Cout) f32."""
    N, HW, Cin = x_rows.shape
    Cout = w1f.shape[-1]
    kernel = functools.partial(_residual_block_kernel, W=W)
    return pl.pallas_call(
        kernel,
        out_shape=jax.ShapeDtypeStruct((N, HW, Cout), x_rows.dtype),
        grid=(N,),                                  # one image per grid step
        in_specs=[
            pl.BlockSpec((1, HW, Cin), lambda n: (n, 0, 0)),
            pl.BlockSpec((3, 3 * Cin, Cout), lambda n: (0, 0, 0)),
            pl.BlockSpec((1, Cout), lambda n: (0, 0)),
            pl.BlockSpec((3, 3 * Cout, Cout), lambda n: (0, 0, 0)),
            pl.BlockSpec((1, Cout), lambda n: (0, 0)),
        ],
        out_specs=pl.BlockSpec((1, HW, Cout), lambda n: (n, 0, 0)),
        compiler_params=pltpu.CompilerParams(
            dimension_semantics=("parallel",),      # v7x: split batch over 2 TCs
            vmem_limit_bytes=32 * 1024 * 1024),
    )(x_rows, w1f, b1, w2f, b2)


def fold_residual_block_params(w1_oihw, g1, be1, rm1, rv1,
                               w2_oihw, g2, be2, rm2, rv2, eps=1e-5):
    """Fold eval-mode BN into conv weights/bias.  Call once at weight-load time."""
    Cout, Cin = w1_oihw.shape[0], w1_oihw.shape[1]
    s1 = g1 / jnp.sqrt(rv1 + eps)
    s2 = g2 / jnp.sqrt(rv2 + eps)
    b1 = (be1 - rm1 * s1).astype(jnp.float32)[None, :]
    b2 = (be2 - rm2 * s2).astype(jnp.float32)[None, :]
    # OIHW -> HWIO, BN scale folded per output channel, packed as
    # [dy, dx*Cin + ci, co] to match the kernel's lane-concat order, in bf16.
    w1f = (jnp.transpose(w1_oihw, (2, 3, 1, 0)) * s1).reshape(3, 3 * Cin, Cout)
    w2f = (jnp.transpose(w2_oihw, (2, 3, 1, 0)) * s2).reshape(3, 3 * Cout, Cout)
    return w1f.astype(jnp.bfloat16), b1, w2f.astype(jnp.bfloat16), b2


def residual_block_nchw(x_nchw, w1_oihw, g1, be1, rm1, rv1,
                        w2_oihw, g2, be2, rm2, rv2, eps=1e-5):
    """PyTorch-facing wrapper: NCHW in/out, OIHW weights, BN params/stats.

    NOTE: in a full network, keep activations in the kernel's (N, H*W, C)
    layout across consecutive blocks and fold the weights once at load time;
    the transposes here only adapt the per-call NCHW interface.
    """
    N, Cin, H, W = x_nchw.shape
    Cout = w1_oihw.shape[0]
    if Cin != Cout:
        # TODO(synk): projection shortcut / stride != 1 not implemented.
        raise NotImplementedError("identity shortcut requires Cin == Cout")
    if W % 8 != 0:
        raise NotImplementedError("kernel assumes W % 8 == 0 (sublane alignment)")
    w1f, b1, w2f, b2 = fold_residual_block_params(
        w1_oihw, g1, be1, rm1, rv1, w2_oihw, g2, be2, rm2, rv2, eps)
    x_rows = jnp.transpose(x_nchw, (0, 2, 3, 1)).reshape(N, H * W, Cin)
    out_rows = _fused_residual_block(x_rows, w1f, b1, w2f, b2, W=W)
    return jnp.transpose(out_rows.reshape(N, H, W, Cout), (0, 3, 1, 2))


def _reference_nchw(x, w1, g1, be1, rm1, rv1, w2, g2, be2, rm2, rv2, eps=1e-5):
    """Faithful f32 eval-mode reference (lax.conv + BatchNorm running stats)."""
    def bn(y, g, b, m, v):
        return ((y - m[None, :, None, None])
                / jnp.sqrt(v[None, :, None, None] + eps)
                * g[None, :, None, None] + b[None, :, None, None])
    y = lax.conv_general_dilated(x, w1, (1, 1), ((1, 1), (1, 1)),
                                 dimension_numbers=('NCHW', 'OIHW', 'NCHW'))
    y = jax.nn.relu(bn(y, g1, be1, rm1, rv1))
    y = lax.conv_general_dilated(y, w2, (1, 1), ((1, 1), (1, 1)),
                                 dimension_numbers=('NCHW', 'OIHW', 'NCHW'))
    y = bn(y, g2, be2, rm2, rv2)
    return jax.nn.relu(y + x)


if __name__ == "__main__":
    key = jax.random.PRNGKey(0)
    N, C, H, W = 2, 4, 16, 16   # inchannel == outchannel (identity shortcut)
    ks = jax.random.split(key, 12)

    x = jax.random.normal(ks[0], (N, C, H, W), jnp.float32)

    # Conv weights (PyTorch OIHW layout)
    w1 = 0.2 * jax.random.normal(ks[1], (C, C, 3, 3), jnp.float32)
    w2 = 0.2 * jax.random.normal(ks[2], (C, C, 3, 3), jnp.float32)

    # BatchNorm params + running stats (eval mode)
    g1 = 1.0 + 0.1 * jax.random.normal(ks[3], (C,), jnp.float32)
    be1 = 0.1 * jax.random.normal(ks[4], (C,), jnp.float32)
    rm1 = 0.1 * jax.random.normal(ks[5], (C,), jnp.float32)
    rv1 = 0.5 + jax.random.uniform(ks[6], (C,), jnp.float32)
    g2 = 1.0 + 0.1 * jax.random.normal(ks[7], (C,), jnp.float32)
    be2 = 0.1 * jax.random.normal(ks[8], (C,), jnp.float32)
    rm2 = 0.1 * jax.random.normal(ks[9], (C,), jnp.float32)
    rv2 = 0.5 + jax.random.uniform(ks[10], (C,), jnp.float32)

    out = jax.jit(residual_block_nchw)(x, w1, g1, be1, rm1, rv1,
                                       w2, g2, be2, rm2, rv2)
    out = jax.block_until_ready(out)

    ref = _reference_nchw(x, w1, g1, be1, rm1, rv1, w2, g2, be2, rm2, rv2)
    ref = jax.block_until_ready(ref)

    # Kernel uses bf16 MXU operands (f32 accumulation), so compare at
    # bf16-level tolerance against the pure-f32 reference.
    np.testing.assert_allclose(np.asarray(out), np.asarray(ref),
                               rtol=5e-2, atol=5e-2)
    print("KERNEL_OK")
</pallas_src>

<mosaic_0001>
module attributes {stable_mosaic.version = 11 : i64} {
  func.func @_residual_block_kernel(%arg0: i32, %arg1: memref<1x256x4xf32, #tpu.memory_space<vmem>>, %arg2: memref<3x12x4xbf16, #tpu.memory_space<vmem>>, %arg3: memref<1x4xf32, #tpu.memory_space<vmem>>, %arg4: memref<3x12x4xbf16, #tpu.memory_space<vmem>>, %arg5: memref<1x4xf32, #tpu.memory_space<vmem>>, %arg6: memref<1x256x4xf32, #tpu.memory_space<vmem>>) attributes {dimension_semantics = [#tpu.dimension_semantics<parallel>], iteration_bounds = array<i64: 2>, scalar_prefetch = 0 : i64, scratch_operands = 0 : i64, tpu.core_type = #tpu.core_type<tc>, window_params = [{transform_indices = @transform_0, window_bounds = array<i64: 1, 256, 4>}, {pipeline_mode = #tpu.pipeline_mode<synchronous>, transform_indices = @transform_1, window_bounds = array<i64: 3, 12, 4>}, {pipeline_mode = #tpu.pipeline_mode<synchronous>, transform_indices = @transform_2, window_bounds = array<i64: 1, 4>}, {pipeline_mode = #tpu.pipeline_mode<synchronous>, transform_indices = @transform_3, window_bounds = array<i64: 3, 12, 4>}, {pipeline_mode = #tpu.pipeline_mode<synchronous>, transform_indices = @transform_4, window_bounds = array<i64: 1, 4>}, {transform_indices = @transform_5, window_bounds = array<i64: 1, 256, 4>}]} {
    %c0 = arith.constant 0 : index
    %c0_0 = arith.constant 0 : index
    %c0_1 = arith.constant 0 : index
    %0 = vector.load %arg1[%c0, %c0_0, %c0_1] : memref<1x256x4xf32, #tpu.memory_space<vmem>>, vector<1x256x4xf32>
    %1 = vector.shape_cast %0 : vector<1x256x4xf32> to vector<256x4xf32>
    %2 = tpu.iota {dimensions = array<i32: 0>} : vector<256x1xi32>
    %c16_i32 = arith.constant 16 : i32
    %c0_i32 = arith.constant 0 : i32
    %3 = arith.cmpi eq, %c16_i32, %c0_i32 : i32
    %c1_i32 = arith.constant 1 : i32
    %4 = arith.select %3, %c1_i32, %c16_i32 : i32
    %5 = vector.broadcast %4 : i32 to vector<256x1xi32>
    %6 = arith.remsi %2, %5 : vector<256x1xi32>
    %c0_i32_2 = arith.constant 0 : i32
    %7 = vector.broadcast %c0_i32_2 : i32 to vector<256x1xi32>
    %8 = arith.cmpi ne, %6, %7 : vector<256x1xi32>
    %c0_i32_3 = arith.constant 0 : i32
    %9 = vector.broadcast %c0_i32_3 : i32 to vector<256x1xi32>
    %10 = arith.cmpi slt, %6, %9 : vector<256x1xi32>
    %c0_i32_4 = arith.constant 0 : i32
    %11 = arith.cmpi slt, %4, %c0_i32_4 : i32
    %12 = vector.broadcast %11 : i1 to vector<256x1xi1>
    %13 = vector.broadcast %12 : vector<256x1xi1> to vector<256x1xi1>
    %14 = arith.xori %10, %13 : vector<256x1xi1>
    %15 = arith.andi %14, %8 : vector<256x1xi1>
    %16 = vector.broadcast %4 : i32 to vector<256x1xi32>
    %17 = arith.addi %6, %16 : vector<256x1xi32>
    %18 = arith.select %15, %17, %6 : vector<256x1xi1>, vector<256x1xi32>
    %c0_i32_5 = arith.constant 0 : i32
    %19 = vector.broadcast %c0_i32_5 : i32 to vector<256x1xi32>
    %20 = arith.cmpi sgt, %18, %19 : vector<256x1xi32>
    %21 = vector.shape_cast %20 : vector<256x1xi1> to vector<256x1xi1>
    %22 = vector.broadcast %21 : vector<256x1xi1> to vector<256x4xi1>
    %c15_i32 = arith.constant 15 : i32
    %23 = vector.broadcast %c15_i32 : i32 to vector<256x1xi32>
    %24 = arith.cmpi slt, %18, %23 : vector<256x1xi32>
    %25 = vector.shape_cast %24 : vector<256x1xi1> to vector<256x1xi1>
    %26 = vector.broadcast %25 : vector<256x1xi1> to vector<256x4xi1>
    %cst = arith.constant 0.000000e+00 : f32
    %27 = vector.broadcast %cst : f32 to vector<1x4xf32>
    %28 = vector.extract_strided_slice %1 {offsets = [0, 0], sizes = [255, 4], strides = [1, 1]} : vector<256x4xf32> to vector<255x4xf32>
    %29 = tpu.concatenate %27, %28 in 0 : vector<1x4xf32>, vector<255x4xf32> -> vector<256x4xf32>
    %cst_6 = arith.constant 0.000000e+00 : f32
    %30 = vector.broadcast %cst_6 : f32 to vector<256x4xf32>
    %31 = arith.select %22, %29, %30 : vector<256x4xi1>, vector<256x4xf32>
    %32 = arith.truncf %31 : vector<256x4xf32> to vector<256x4xbf16>
    %33 = arith.truncf %1 : vector<256x4xf32> to vector<256x4xbf16>
    %34 = vector.extract_strided_slice %1 {offsets = [1, 0], sizes = [255, 4], strides = [1, 1]} : vector<256x4xf32> to vector<255x4xf32>
    %35 = tpu.concatenate %34, %27 in 0 : vector<255x4xf32>, vector<1x4xf32> -> vector<256x4xf32>
    %cst_7 = arith.constant 0.000000e+00 : f32
    %36 = vector.broadcast %cst_7 : f32 to vector<256x4xf32>
    %37 = arith.select %26, %35, %36 : vector<256x4xi1>, vector<256x4xf32>
    %38 = arith.truncf %37 : vector<256x4xf32> to vector<256x4xbf16>
    %39 = tpu.concatenate %32, %33, %38 in 1 : vector<256x4xbf16>, vector<256x4xbf16>, vector<256x4xbf16> -> vector<256x12xbf16>
    %cst_8 = arith.constant 0.000000e+00 : bf16
    %40 = vector.broadcast %cst_8 : bf16 to vector<16x12xbf16>
    %41 = tpu.concatenate %40, %39, %40 in 0 : vector<16x12xbf16>, vector<256x12xbf16>, vector<16x12xbf16> -> vector<288x12xbf16>
    %42 = vector.extract_strided_slice %41 {offsets = [0, 0], sizes = [256, 12], strides = [1, 1]} : vector<288x12xbf16> to vector<256x12xbf16>
    %c0_9 = arith.constant 0 : index
    %c0_10 = arith.constant 0 : index
    %c0_11 = arith.constant 0 : index
    %43 = vector.load %arg2[%c0_9, %c0_10, %c0_11] : memref<3x12x4xbf16, #tpu.memory_space<vmem>>, vector<1x12x4xbf16>
    %44 = vector.shape_cast %43 : vector<1x12x4xbf16> to vector<12x4xbf16>
    %cst_12 = arith.constant dense<0.000000e+00> : vector<256x4xf32>
    %45 = tpu.matmul %42, %44, %cst_12 {dimension_numbers = #tpu.dot_dimension_numbers<[1], [0], [0], [1], [0, 0, 1, 1], [], []>} : vector<256x12xbf16>, vector<12x4xbf16>, vector<256x4xf32> -> vector<256x4xf32>
    %46 = vector.extract_strided_slice %41 {offsets = [16, 0], sizes = [256, 12], strides = [1, 1]} : vector<288x12xbf16> to vector<256x12xbf16>
    %c1 = arith.constant 1 : index
    %c0_13 = arith.constant 0 : index
    %c0_14 = arith.constant 0 : index
    %47 = vector.load %arg2[%c1, %c0_13, %c0_14] : memref<3x12x4xbf16, #tpu.memory_space<vmem>>, vector<1x12x4xbf16>
    %48 = vector.shape_cast %47 : vector<1x12x4xbf16> to vector<12x4xbf16>
    %cst_15 = arith.constant dense<0.000000e+00> : vector<256x4xf32>
    %49 = tpu.matmul %46, %48, %cst_15 {dimension_numbers = #tpu.dot_dimension_numbers<[1], [0], [0], [1], [0, 0, 1, 1], [], []>} : vector<256x12xbf16>, vector<12x4xbf16>, vector<256x4xf32> -> vector<256x4xf32>
    %50 = arith.addf %45, %49 : vector<256x4xf32>
    %51 = vector.extract_strided_slice %41 {offsets = [32, 0], sizes = [256, 12], strides = [1, 1]} : vector<288x12xbf16> to vector<256x12xbf16>
    %c2 = arith.constant 2 : index
    %c0_16 = arith.constant 0 : index
    %c0_17 = arith.constant 0 : index
    %52 = vector.load %arg2[%c2, %c0_16, %c0_17] : memref<3x12x4xbf16, #tpu.memory_space<vmem>>, vector<1x12x4xbf16>
    %53 = vector.shape_cast %52 : vector<1x12x4xbf16> to vector<12x4xbf16>
    %cst_18 = arith.constant dense<0.000000e+00> : vector<256x4xf32>
    %54 = tpu.matmul %51, %53, %cst_18 {dimension_numbers = #tpu.dot_dimension_numbers<[1], [0], [0], [1], [0, 0, 1, 1], [], []>} : vector<256x12xbf16>, vector<12x4xbf16>, vector<256x4xf32> -> vector<256x4xf32>
    %55 = arith.addf %50, %54 : vector<256x4xf32>
    %c0_19 = arith.constant 0 : index
    %c0_20 = arith.constant 0 : index
    %56 = vector.load %arg3[%c0_19, %c0_20] : memref<1x4xf32, #tpu.memory_space<vmem>>, vector<1x4xf32>
    %57 = vector.broadcast %56 : vector<1x4xf32> to vector<256x4xf32>
    %58 = arith.addf %55, %57 : vector<256x4xf32>
    %cst_21 = arith.constant 0.000000e+00 : f32
    %59 = vector.broadcast %cst_21 : f32 to vector<256x4xf32>
    %60 = arith.maximumf %58, %59 : vector<256x4xf32>
    %cst_22 = arith.constant 0.000000e+00 : f32
    %61 = vector.broadcast %cst_22 : f32 to vector<1x4xf32>
    %62 = vector.extract_strided_slice %60 {offsets = [0, 0], sizes = [255, 4], strides = [1, 1]} : vector<256x4xf32> to vector<255x4xf32>
    %63 = tpu.concatenate %61, %62 in 0 : vector<1x4xf32>, vector<255x4xf32> -> vector<256x4xf32>
    %cst_23 = arith.constant 0.000000e+00 : f32
    %64 = vector.broadcast %cst_23 : f32 to vector<256x4xf32>
    %65 = arith.select %22, %63, %64 : vector<256x4xi1>, vector<256x4xf32>
    %66 = arith.truncf %65 : vector<256x4xf32> to vector<256x4xbf16>
    %67 = arith.truncf %60 : vector<256x4xf32> to vector<256x4xbf16>
    %68 = vector.extract_strided_slice %60 {offsets = [1, 0], sizes = [255, 4], strides = [1, 1]} : vector<256x4xf32> to vector<255x4xf32>
    %69 = tpu.concatenate %68, %61 in 0 : vector<255x4xf32>, vector<1x4xf32> -> vector<256x4xf32>
    %cst_24 = arith.constant 0.000000e+00 : f32
    %70 = vector.broadcast %cst_24 : f32 to vector<256x4xf32>
    %71 = arith.select %26, %69, %70 : vector<256x4xi1>, vector<256x4xf32>
    %72 = arith.truncf %71 : vector<256x4xf32> to vector<256x4xbf16>
    %73 = tpu.concatenate %66, %67, %72 in 1 : vector<256x4xbf16>, vector<256x4xbf16>, vector<256x4xbf16> -> vector<256x12xbf16>
    %cst_25 = arith.constant 0.000000e+00 : bf16
    %74 = vector.broadcast %cst_25 : bf16 to vector<16x12xbf16>
    %75 = tpu.concatenate %74, %73, %74 in 0 : vector<16x12xbf16>, vector<256x12xbf16>, vector<16x12xbf16> -> vector<288x12xbf16>
    %76 = vector.extract_strided_slice %75 {offsets = [0, 0], sizes = [256, 12], strides = [1, 1]} : vector<288x12xbf16> to vector<256x12xbf16>
    %c0_26 = arith.constant 0 : index
    %c0_27 = arith.constant 0 : index
    %c0_28 = arith.constant 0 : index
    %77 = vector.load %arg4[%c0_26, %c0_27, %c0_28] : memref<3x12x4xbf16, #tpu.memory_space<vmem>>, vector<1x12x4xbf16>
    %78 = vector.shape_cast %77 : vector<1x12x4xbf16> to vector<12x4xbf16>
    %cst_29 = arith.constant dense<0.000000e+00> : vector<256x4xf32>
    %79 = tpu.matmul %76, %78, %cst_29 {dimension_numbers = #tpu.dot_dimension_numbers<[1], [0], [0], [1], [0, 0, 1, 1], [], []>} : vector<256x12xbf16>, vector<12x4xbf16>, vector<256x4xf32> -> vector<256x4xf32>
    %80 = vector.extract_strided_slice %75 {offsets = [16, 0], sizes = [256, 12], strides = [1, 1]} : vector<288x12xbf16> to vector<256x12xbf16>
    %c1_30 = arith.constant 1 : index
    %c0_31 = arith.constant 0 : index
    %c0_32 = arith.constant 0 : index
    %81 = vector.load %arg4[%c1_30, %c0_31, %c0_32] : memref<3x12x4xbf16, #tpu.memory_space<vmem>>, vector<1x12x4xbf16>
    %82 = vector.shape_cast %81 : vector<1x12x4xbf16> to vector<12x4xbf16>
    %cst_33 = arith.constant dense<0.000000e+00> : vector<256x4xf32>
    %83 = tpu.matmul %80, %82, %cst_33 {dimension_numbers = #tpu.dot_dimension_numbers<[1], [0], [0], [1], [0, 0, 1, 1], [], []>} : vector<256x12xbf16>, vector<12x4xbf16>, vector<256x4xf32> -> vector<256x4xf32>
    %84 = arith.addf %79, %83 : vector<256x4xf32>
    %85 = vector.extract_strided_slice %75 {offsets = [32, 0], sizes = [256, 12], strides = [1, 1]} : vector<288x12xbf16> to vector<256x12xbf16>
    %c2_34 = arith.constant 2 : index
    %c0_35 = arith.constant 0 : index
    %c0_36 = arith.constant 0 : index
    %86 = vector.load %arg4[%c2_34, %c0_35, %c0_36] : memref<3x12x4xbf16, #tpu.memory_space<vmem>>, vector<1x12x4xbf16>
    %87 = vector.shape_cast %86 : vector<1x12x4xbf16> to vector<12x4xbf16>
    %cst_37 = arith.constant dense<0.000000e+00> : vector<256x4xf32>
    %88 = tpu.matmul %85, %87, %cst_37 {dimension_numbers = #tpu.dot_dimension_numbers<[1], [0], [0], [1], [0, 0, 1, 1], [], []>} : vector<256x12xbf16>, vector<12x4xbf16>, vector<256x4xf32> -> vector<256x4xf32>
    %89 = arith.addf %84, %88 : vector<256x4xf32>
    %c0_38 = arith.constant 0 : index
    %c0_39 = arith.constant 0 : index
    %90 = vector.load %arg5[%c0_38, %c0_39] : memref<1x4xf32, #tpu.memory_space<vmem>>, vector<1x4xf32>
    %91 = vector.broadcast %90 : vector<1x4xf32> to vector<256x4xf32>
    %92 = arith.addf %89, %91 : vector<256x4xf32>
    %93 = arith.addf %92, %1 : vector<256x4xf32>
    %cst_40 = arith.constant 0.000000e+00 : f32
    %94 = vector.broadcast %cst_40 : f32 to vector<256x4xf32>
    %95 = arith.maximumf %93, %94 : vector<256x4xf32>
    %c0_41 = arith.constant 0 : index
    %c0_42 = arith.constant 0 : index
    %c0_43 = arith.constant 0 : index
    %96 = vector.load %arg6[%c0_41, %c0_42, %c0_43] : memref<1x256x4xf32, #tpu.memory_space<vmem>>, vector<1x256x4xf32>
    %97 = vector.shape_cast %96 : vector<1x256x4xf32> to vector<256x4xf32>
    %98 = vector.shape_cast %95 : vector<256x4xf32> to vector<1x256x4xf32>
    tpu.vector_store %arg6[%c0_41, %c0_42, %c0_43], %98 {strides = array<i32>} : memref<1x256x4xf32, #tpu.memory_space<vmem>>, vector<1x256x4xf32>,
    return
  }
  func.func @transform_0(%arg0: i32) -> (i32, i32, i32) {
    %c0_i32 = arith.constant 0 : i32
    %c0_i32_0 = arith.constant 0 : i32
    %c0_i32_1 = arith.constant 0 : i32
    return %arg0, %c0_i32, %c0_i32_0 : i32, i32, i32
  }
  func.func @transform_1(%arg0: i32) -> (i32, i32, i32) {
    %c0_i32 = arith.constant 0 : i32
    %c0_i32_0 = arith.constant 0 : i32
    %c0_i32_1 = arith.constant 0 : i32
    %c0_i32_2 = arith.constant 0 : i32
    return %c0_i32, %c0_i32_0, %c0_i32_1 : i32, i32, i32
  }
  func.func @transform_2(%arg0: i32) -> (i32, i32) {
    %c0_i32 = arith.constant 0 : i32
    %c0_i32_0 = arith.constant 0 : i32
    %c0_i32_1 = arith.constant 0 : i32
    return %c0_i32, %c0_i32_0 : i32, i32
  }
  func.func @transform_3(%arg0: i32) -> (i32, i32, i32) {
    %c0_i32 = arith.constant 0 : i32
    %c0_i32_0 = arith.constant 0 : i32
    %c0_i32_1 = arith.constant 0 : i32
    %c0_i32_2 = arith.constant 0 : i32
    return %c0_i32, %c0_i32_0, %c0_i32_1 : i32, i32, i32
  }
  func.func @transform_4(%arg0: i32) -> (i32, i32) {
    %c0_i32 = arith.constant 0 : i32
    %c0_i32_0 = arith.constant 0 : i32
    %c0_i32_1 = arith.constant 0 : i32
    return %c0_i32, %c0_i32_0 : i32, i32
  }
  func.func @transform_5(%arg0: i32) -> (i32, i32, i32) {
    %c0_i32 = arith.constant 0 : i32
    %c0_i32_0 = arith.constant 0 : i32
    %c0_i32_1 = arith.constant 0 : i32
    return %arg0, %c0_i32, %c0_i32_0 : i32, i32, i32
  }
}

</mosaic_0001>

<llo_original>
// kernel: residual_block_nchw.1
$region0: #{residual_block_nchw.1}
  #allocation0 [shape = 'u32[]', space=smem, size = 0x4, offset = 0x4, fixed_abs, tag = 'smem constant byte address 0x4 - core index']
  #allocation1 [shape = 'u32[72,128]{1,0:T(1,128)}', space=vmem, size = 0x9000, scoped, tag = 'internal scratch']
  %s0 = inlined_call_operand.vmem [shape: f32[2,256,4], index: 0, kind: input, shape index: {}]
  %s1 = inlined_call_operand.vmem [shape: bf16[3,12,4], index: 1, kind: input, shape index: {}]
  %s2 = inlined_call_operand.vmem [shape: f32[1,4], index: 2, kind: input, shape index: {}]
  %s3 = inlined_call_operand.vmem [shape: bf16[3,12,4], index: 3, kind: input, shape index: {}]
  %s4 = inlined_call_operand.vmem [shape: f32[1,4], index: 4, kind: input, shape index: {}]
  %s5 = inlined_call_operand.vmem [shape: f32[2,256,4], index: 5, kind: output, shape index: {}]
  %s6 = sld [smem:[#allocation0]]
  $region53: #{residual_block_nchw.1} parent=0
    _
  %s8 = ssub.s32 1, %s6
  %s9 = scalar_select 0, %s8, %s6
  loop: start=0, step=1, limit=4
  $region2: #{residual_block_nchw.1} parent=0 // loop_pre_header
    _
  $region3: #{residual_block_nchw.1} parent=0 // loop_header
    %s11 = sphi 0, %s15
    %p12 = scmp.ge.s32.totalorder %s11, 4
    %s21 = sphi 0, %s23
    %s24 = sphi 0, %s21
    %s25 = sphi 0, %s24
    %s41 = sphi 0, %s25
    %s45 = sphi 0, %s45
    %s47 = sphi 0, %s45
    %s48 = sphi 0, %s47
    %s62 = sphi 0, %s48
    %s66 = sphi 0, %s66
    %s68 = sphi 0, %s66
    %s69 = sphi 0, %s68
    %s83 = sphi 0, %s69
    %s87 = sphi 0, %s87
    %s89 = sphi 0, %s87
    %s90 = sphi 0, %s89
    %s104 = sphi 0, %s90
    %s108 = sphi 0, %s108
    %s110 = sphi 0, %s108
    %s111 = sphi 0, %s110
    %s125 = sphi 0, %s111
    %s131 = sphi 0, %s133
    %s134 = sphi 0, %s131
    %s135 = sphi 0, %s134
    %s151 = sphi 0, %s135
  $region4: #{residual_block_nchw.1} parent=0 // loop_header_branch
    %14 = sbr.rel (%p12) target = $region8
  $region5: #{residual_block_nchw.1} parent=0 // loop_body
    %s16 = ssub.s32 %s11, 1
    %s17 = ssub.s32 %s11, 2
    %s18 = sadd.s32 %s11, 1
    %s19 = ssub.s32 %s11, %s18
    %p20 = scmp.eq.s32.totalorder %s19, 0
    %s22 = sadd.s32 %s21, 1
    %s23 = scalar_select %p20, %s21, %s22
    %p26 = pneg %p20
    %p27 = scmp.eq.s32.totalorder %s11, 1
    %p28 = por %p26, %p27
    %p29 = scmp.ne.s32.totalorder %s21, %s24
    %p30 = scmp.eq.s32.totalorder %s11, 0
    %p31 = por %p29, %p30
    %p32 = scmp.ne.s32.totalorder %s21, %s24
    %p33 = scmp.eq.s32.totalorder %s16, 1
    %p34 = por %p32, %p33
    %p35 = scmp.ne.s32.totalorder %s24, %s25
    %p36 = scmp.eq.s32.totalorder %s16, 0
    %p37 = por %p35, %p36
    %p38 = scmp.ne.s32.totalorder %s24, %s25
    %p39 = scmp.eq.s32.totalorder %s17, 1
    %p40 = por %p38, %p39
    %p42 = scmp.ne.s32.totalorder %s25, %s41
    %p43 = scmp.eq.s32.totalorder %s17, 0
    %p44 = por %p42, %p43
    %s46 = sadd.s32 %s45, 1
    %p49 = scmp.eq.s32.totalorder %s11, 1
    %p50 = scmp.ne.s32.totalorder %s45, %s47
    %p51 = scmp.eq.s32.totalorder %s11, 0
    %p52 = por %p50, %p51
    %p53 = scmp.ne.s32.totalorder %s45, %s47
    %p54 = scmp.eq.s32.totalorder %s16, 1
    %p55 = por %p53, %p54
    %p56 = scmp.ne.s32.totalorder %s47, %s48
    %p57 = scmp.eq.s32.totalorder %s16, 0
    %p58 = por %p56, %p57
    %p59 = scmp.ne.s32.totalorder %s47, %s48
    %p60 = scmp.eq.s32.totalorder %s17, 1
    %p61 = por %p59, %p60
    %p63 = scmp.ne.s32.totalorder %s48, %s62
    %p64 = scmp.eq.s32.totalorder %s17, 0
    %p65 = por %p63, %p64
    %s67 = sadd.s32 %s66, 1
    %p70 = scmp.eq.s32.totalorder %s11, 1
    %p71 = scmp.ne.s32.totalorder %s66, %s68
    %p72 = scmp.eq.s32.totalorder %s11, 0
    %p73 = por %p71, %p72
    %p74 = scmp.ne.s32.totalorder %s66, %s68
    %p75 = scmp.eq.s32.totalorder %s16, 1
    %p76 = por %p74, %p75
    %p77 = scmp.ne.s32.totalorder %s68, %s69
    %p78 = scmp.eq.s32.totalorder %s16, 0
    %p79 = por %p77, %p78
    %p80 = scmp.ne.s32.totalorder %s68, %s69
    %p81 = scmp.eq.s32.totalorder %s17, 1
    %p82 = por %p80, %p81
    %p84 = scmp.ne.s32.totalorder %s69, %s83
    %p85 = scmp.eq.s32.totalorder %s17, 0
    %p86 = por %p84, %p85
    %s88 = sadd.s32 %s87, 1
    %p91 = scmp.eq.s32.totalorder %s11, 1
    %p92 = scmp.ne.s32.totalorder %s87, %s89
    %p93 = scmp.eq.s32.totalorder %s11, 0
    %p94 = por %p92, %p93
    %p95 = scmp.ne.s32.totalorder %s87, %s89
    %p96 = scmp.eq.s32.totalorder %s16, 1
    %p97 = por %p95, %p96
    %p98 = scmp.ne.s32.totalorder %s89, %s90
    %p99 = scmp.eq.s32.totalorder %s16, 0
    %p100 = por %p98, %p99
    %p101 = scmp.ne.s32.totalorder %s89, %s90
    %p102 = scmp.eq.s32.totalorder %s17, 1
    %p103 = por %p101, %p102
    %p105 = scmp.ne.s32.totalorder %s90, %s104
    %p106 = scmp.eq.s32.totalorder %s17, 0
    %p107 = por %p105, %p106
    %s109 = sadd.s32 %s108, 1
    %p112 = scmp.eq.s32.totalorder %s11, 1
    %p113 = scmp.ne.s32.totalorder %s108, %s110
    %p114 = scmp.eq.s32.totalorder %s11, 0
    %p115 = por %p113, %p114
    %p116 = scmp.ne.s32.totalorder %s108, %s110
    %p117 = scmp.eq.s32.totalorder %s16, 1
    %p118 = por %p116, %p117
    %p119 = scmp.ne.s32.totalorder %s110, %s111
    %p120 = scmp.eq.s32.totalorder %s16, 0
    %p121 = por %p119, %p120
    %p122 = scmp.ne.s32.totalorder %s110, %s111
    %p123 = scmp.eq.s32.totalorder %s17, 1
    %p124 = por %p122, %p123
    %p126 = scmp.ne.s32.totalorder %s111, %s125
    %p127 = scmp.eq.s32.totalorder %s17, 0
    %p128 = por %p126, %p127
    %s129 = ssub.s32 %s11, %s18
    %p130 = scmp.eq.s32.totalorder %s129, 0
    %s132 = sadd.s32 %s131, 1
    %s133 = scalar_select %p130, %s131, %s132
    %p136 = pneg %p130
    %p137 = scmp.eq.s32.totalorder %s11, 1
    %p138 = por %p136, %p137
    %p139 = scmp.ne.s32.totalorder %s131, %s134
    %p140 = scmp.eq.s32.totalorder %s11, 0
    %p141 = por %p139, %p140
    %p142 = scmp.ne.s32.totalorder %s131, %s134
    %p143 = scmp.eq.s32.totalorder %s16, 1
    %p144 = por %p142, %p143
    %p145 = scmp.ne.s32.totalorder %s134, %s135
    %p146 = scmp.eq.s32.totalorder %s16, 0
    %p147 = por %p145, %p146
    %p148 = scmp.ne.s32.totalorder %s134, %s135
    %p149 = scmp.eq.s32.totalorder %s17, 1
    %p150 = por %p148, %p149
    %p152 = scmp.ne.s32.totalorder %s135, %s151
    %p153 = scmp.eq.s32.totalorder %s17, 0
    %p154 = por %p152, %p153
    %p155 = scmp.le.s32.totalorder 1, %s11
    %p156 = scmp.lt.s32.totalorder %s11, 3
    %p157 = pnand %p155, %p156
    %p158 = pneg %p157
    // Predicated region
    $region9: #{residual_block_nchw.1} parent=5 // pred_check
      _
    $region10: #{residual_block_nchw.1} parent=5 // pred_check_branch
      %160 = sbr.rel (%p157) target = $region12
    $region11: #{residual_block_nchw.1} parent=5 // pred_region
      %s161 = ssub.s32 %s11, 1
      // Predicated region
      $region13: #{residual_block_nchw.1} parent=11 // pred_check
        %p162 = pneg %p58
      $region14: #{residual_block_nchw.1} parent=11 // pred_check_branch
        %164 = sbr.rel (%p162) target = $region16
      $region15: #{residual_block_nchw.1} parent=11 // pred_region
        _
      $region16: #{residual_block_nchw.1} parent=11 // pred_fallthru
        _
      // Predicated region
      $region17: #{residual_block_nchw.1} parent=11 // pred_check
        %p165 = pneg %p79
      $region18: #{residual_block_nchw.1} parent=11 // pred_check_branch
        %167 = sbr.rel (%p165) target = $region20
      $region19: #{residual_block_nchw.1} parent=11 // pred_region
        _
      $region20: #{residual_block_nchw.1} parent=11 // pred_fallthru
        _
      // Predicated region
      $region21: #{residual_block_nchw.1} parent=11 // pred_check
        %p168 = pneg %p100
      $region22: #{residual_block_nchw.1} parent=11 // pred_check_branch
        %170 = sbr.rel (%p168) target = $region24
      $region23: #{residual_block_nchw.1} parent=11 // pred_region
        _
      $region24: #{residual_block_nchw.1} parent=11 // pred_fallthru
        _
      // Predicated region
      $region25: #{residual_block_nchw.1} parent=11 // pred_check
        %p171 = pneg %p121
      $region26: #{residual_block_nchw.1} parent=11 // pred_check_branch
        %173 = sbr.rel (%p171) target = $region28
      $region27: #{residual_block_nchw.1} parent=11 // pred_region
        _
      $region28: #{residual_block_nchw.1} parent=11 // pred_fallthru
        _
    $region12: #{residual_block_nchw.1} parent=5 // pred_fallthru
      _
    %p174 = scmp.lt.s32.totalorder %s11, 2
    // Predicated region
    $region29: #{residual_block_nchw.1} parent=5 // pred_check
      %p175 = pneg %p174
    $region30: #{residual_block_nchw.1} parent=5 // pred_check_branch
      %177 = sbr.rel (%p175) target = $region32
    $region31: #{residual_block_nchw.1} parent=5 // pred_region
      // Predicated region
      $region33: #{residual_block_nchw.1} parent=31 // pred_check
        %p178 = pneg %p31
      $region34: #{residual_block_nchw.1} parent=31 // pred_check_branch
        %180 = sbr.rel (%p178) target = $region36
      $region35: #{residual_block_nchw.1} parent=31 // pred_region
        %p181 = scmp.lt.s32.totalorder %s11, 1
        %s182 = scalar_select %p181, %s11, 1
        %s183 = smul.addr %s182, 32
        %s184 = smul.addr %s183, 8
        %s185 = scalar_lea.vmem %s0, %s184
      $region36: #{residual_block_nchw.1} parent=31 // pred_fallthru
        _
    $region32: #{residual_block_nchw.1} parent=5 // pred_fallthru
      _
    %p186 = scmp.le.s32.totalorder 1, %s11
    %p187 = scmp.lt.s32.totalorder %s11, 3
    %p188 = pnand %p186, %p187
    %p189 = pneg %p188
    // Predicated region
    $region37: #{residual_block_nchw.1} parent=5 // pred_check
      _
    $region38: #{residual_block_nchw.1} parent=5 // pred_check_branch
      %191 = sbr.rel (%p188) target = $region40
    $region39: #{residual_block_nchw.1} parent=5 // pred_region
      %s192 = ssub.s32 %s11, 1
      %p193 = scmp.lt.s32.totalorder %s16, 1
      %s194 = scalar_select %p193, %s16, 1
      %s195 = smul.addr %s194, 32
      %s196 = smul.addr %s195, 8
      %s197 = scalar_lea.vmem %s0, %s196
      %p198 = pneg %p37
      %p199 = pneg %p34
      %p200 = pneg %p58
      %p201 = pneg %p55
      %p202 = pneg %p79
      %p203 = pneg %p76
      %p204 = pneg %p100
      %p205 = pneg %p97
      %p206 = pneg %p121
      %p207 = pneg %p118
      %p208 = pneg %p147
      %p209 = pneg %p144
      %p210 = scmp.lt.s32.totalorder %s16, 1
      %s211 = scalar_select %p210, %s16, 1
      %s212 = smul.addr %s211, 32
      %s213 = smul.addr %s212, 8
      %s214 = scalar_lea.vmem %s5, %s213
      %p215 = scmp.lt.s32.totalorder %s16, 1
      %s216 = scalar_select %p215, %s16, 1
      %s217 = smul.addr %s216, 32
      %s218 = smul.addr %s217, 8
      %s219 = scalar_lea.vmem %s0, %s218
      %p220 = scmp.lt.s32.totalorder %s16, 1
      %s221 = scalar_select %p220, %s16, 1
      %s222 = smul.addr %s221, 32
      %s223 = smul.addr %s222, 8
      %s224 = scalar_lea.vmem %s5, %s223
      %v226 = vld [vmem:[%s219] sm:$0xff]
      %v227 = vld [vmem:[%s219 + $0x8] sm:$0xff]
      %v228 = vld [vmem:[%s219 + $0x10] sm:$0xff]
      %v229 = vld [vmem:[%s219 + $0x18] sm:$0xff]
      %v230 = vld [vmem:[%s219 + $0x20] sm:$0xff]
      %v231 = vld [vmem:[%s219 + $0x28] sm:$0xff]
      %v232 = vld [vmem:[%s219 + $0x30] sm:$0xff]
      %v233 = vld [vmem:[%s219 + $0x38] sm:$0xff]
      %v234 = vld [vmem:[%s219 + $0x40] sm:$0xff]
      %v235 = vld [vmem:[%s219 + $0x48] sm:$0xff]
      %v236 = vld [vmem:[%s219 + $0x50] sm:$0xff]
      %v237 = vld [vmem:[%s219 + $0x58] sm:$0xff]
      %v238 = vld [vmem:[%s219 + $0x60] sm:$0xff]
      %v239 = vld [vmem:[%s219 + $0x68] sm:$0xff]
      %v240 = vld [vmem:[%s219 + $0x70] sm:$0xff]
      %v241 = vld [vmem:[%s219 + $0x78] sm:$0xff]
      %v242 = vld [vmem:[%s219 + $0x80] sm:$0xff]
      %v243 = vld [vmem:[%s219 + $0x88] sm:$0xff]
      %v244 = vld [vmem:[%s219 + $0x90] sm:$0xff]
      %v245 = vld [vmem:[%s219 + $0x98] sm:$0xff]
      %v246 = vld [vmem:[%s219 + $0xa0] sm:$0xff]
      %v247 = vld [vmem:[%s219 + $0xa8] sm:$0xff]
      %v248 = vld [vmem:[%s219 + $0xb0] sm:$0xff]
      %v249 = vld [vmem:[%s219 + $0xb8] sm:$0xff]
      %v250 = vld [vmem:[%s219 + $0xc0] sm:$0xff]
      %v251 = vld [vmem:[%s219 + $0xc8] sm:$0xff]
      %v252 = vld [vmem:[%s219 + $0xd0] sm:$0xff]
      %v253 = vld [vmem:[%s219 + $0xd8] sm:$0xff]
      %v254 = vld [vmem:[%s219 + $0xe0] sm:$0xff]
      %v255 = vld [vmem:[%s219 + $0xe8] sm:$0xff]
      %v256 = vld [vmem:[%s219 + $0xf0] sm:$0xff]
      %v257 = vld [vmem:[%s219 + $0xf8] sm:$0xff]
      %v258 = vlaneseq
      %v259 = vshrl.u32 %v258, 7
      %v260 = vadd.s32 %v259, 8
      %v261 = vadd.s32 %v259, 16
      %v262 = vadd.s32 %v259, 24
      %v263 = vadd.s32 %v259, 32
      %v264 = vadd.s32 %v259, 40
      %v265 = vadd.s32 %v259, 48
      %v266 = vadd.s32 %v259, 56
      %v267 = vadd.s32 %v259, 64
      %v268 = vadd.s32 %v259, 72
      %v269 = vadd.s32 %v259, 80
      %v270 = vadd.s32 %v259, 88
      %v271 = vadd.s32 %v259, 96
      %v272 = vadd.s32 %v259, 104
      %v273 = vadd.s32 %v259, 112
      %v274 = vadd.s32 %v259, 120
      %v275 = vadd.s32 %v259, 128
      %v276 = vadd.s32 %v259, 136
      %v277 = vadd.s32 %v259, 144
      %v278 = vadd.s32 %v259, 152
      %v279 = vadd.s32 %v259, 160
      %v280 = vadd.s32 %v259, 168
      %v281 = vadd.s32 %v259, 176
      %v282 = vadd.s32 %v259, 184
      %v283 = vadd.s32 %v259, 192
      %v284 = vadd.s32 %v259, 200
      %v285 = vadd.s32 %v259, 208
      %v286 = vadd.s32 %v259, 216
      %v287 = vadd.s32 %v259, 224
      %v288 = vadd.s32 %v259, 232
      %v289 = vadd.s32 %v259, 240
      %v290 = vadd.s32 %v259, 248
      %vm291 = vcmp.lt.s32.totalorder %v259, 0
      %v292 = vsub.s32 0, %v259
      %v293 = vsel %vm291, %v292, %v259
      %v294 = vshrl.u32 %v293, 4
      %v295 = vand.u32 %v293, 15
      %v296 = vsub.s32 0, %v295
      %v297 = vsel %vm291, %v296, %v295
      %vm298 = vcmp.lt.s32.totalorder %v260, 0
      %v299 = vsub.s32 0, %v260
      %v300 = vsel %vm298, %v299, %v260
      %v301 = vshrl.u32 %v300, 4
      %v302 = vand.u32 %v300, 15
      %v303 = vsub.s32 0, %v302
      %v304 = vsel %vm298, %v303, %v302
      %vm305 = vcmp.lt.s32.totalorder %v261, 0
      %v306 = vsub.s32 0, %v261
      %v307 = vsel %vm305, %v306, %v261
      %v308 = vshrl.u32 %v307, 4
      %v309 = vand.u32 %v307, 15
      %v310 = vsub.s32 0, %v309
      %v311 = vsel %vm305, %v310, %v309
      %vm312 = vcmp.lt.s32.totalorder %v262, 0
      %v313 = vsub.s32 0, %v262
      %v314 = vsel %vm312, %v313, %v262
      %v315 = vshrl.u32 %v314, 4
      %v316 = vand.u32 %v314, 15
      %v317 = vsub.s32 0, %v316
      %v318 = vsel %vm312, %v317, %v316
      %vm319 = vcmp.lt.s32.totalorder %v263, 0
      %v320 = vsub.s32 0, %v263
      %v321 = vsel %vm319, %v320, %v263
      %v322 = vshrl.u32 %v321, 4
      %v323 = vand.u32 %v321, 15
      %v324 = vsub.s32 0, %v323
      %v325 = vsel %vm319, %v324, %v323
      %vm326 = vcmp.lt.s32.totalorder %v264, 0
      %v327 = vsub.s32 0, %v264
      %v328 = vsel %vm326, %v327, %v264
      %v329 = vshrl.u32 %v328, 4
      %v330 = vand.u32 %v328, 15
      %v331 = vsub.s32 0, %v330
      %v332 = vsel %vm326, %v331, %v330
      %vm333 = vcmp.lt.s32.totalorder %v265, 0
      %v334 = vsub.s32 0, %v265
      %v335 = vsel %vm333, %v334, %v265
      %v336 = vshrl.u32 %v335, 4
      %v337 = vand.u32 %v335, 15
      %v338 = vsub.s32 0, %v337
      %v339 = vsel %vm333, %v338, %v337
      %vm340 = vcmp.lt.s32.totalorder %v266, 0
      %v341 = vsub.s32 0, %v266
      %v342 = vsel %vm340, %v341, %v266
      %v343 = vshrl.u32 %v342, 4
      %v344 = vand.u32 %v342, 15
      %v345 = vsub.s32 0, %v344
      %v346 = vsel %vm340, %v345, %v344
      %vm347 = vcmp.lt.s32.totalorder %v267, 0
      %v348 = vsub.s32 0, %v267
      %v349 = vsel %vm347, %v348, %v267
      %v350 = vshrl.u32 %v349, 4
      %v351 = vand.u32 %v349, 15
      %v352 = vsub.s32 0, %v351
      %v353 = vsel %vm347, %v352, %v351
      %vm354 = vcmp.lt.s32.totalorder %v268, 0
      %v355 = vsub.s32 0, %v268
      %v356 = vsel %vm354, %v355, %v268
      %v357 = vshrl.u32 %v356, 4
      %v358 = vand.u32 %v356, 15
      %v359 = vsub.s32 0, %v358
      %v360 = vsel %vm354, %v359, %v358
      %vm361 = vcmp.lt.s32.totalorder %v269, 0
      %v362 = vsub.s32 0, %v269
      %v363 = vsel %vm361, %v362, %v269
      %v364 = vshrl.u32 %v363, 4
      %v365 = vand.u32 %v363, 15
      %v366 = vsub.s32 0, %v365
      %v367 = vsel %vm361, %v366, %v365
      %vm368 = vcmp.lt.s32.totalorder %v270, 0
      %v369 = vsub.s32 0, %v270
      %v370 = vsel %vm368, %v369, %v270
      %v371 = vshrl.u32 %v370, 4
      %v372 = vand.u32 %v370, 15
      %v373 = vsub.s32 0, %v372
      %v374 = vsel %vm368, %v373, %v372
      %vm375 = vcmp.lt.s32.totalorder %v271, 0
      %v376 = vsub.s32 0, %v271
      %v377 = vsel %vm375, %v376, %v271
      %v378 = vshrl.u32 %v377, 4
      %v379 = vand.u32 %v377, 15
      %v380 = vsub.s32 0, %v379
      %v381 = vsel %vm375, %v380, %v379
      %vm382 = vcmp.lt.s32.totalorder %v272, 0
      %v383 = vsub.s32 0, %v272
      %v384 = vsel %vm382, %v383, %v272
      %v385 = vshrl.u32 %v384, 4
      %v386 = vand.u32 %v384, 15
      %v387 = vsub.s32 0, %v386
      %v388 = vsel %vm382, %v387, %v386
      %vm389 = vcmp.lt.s32.totalorder %v273, 0
      %v390 = vsub.s32 0, %v273
      %v391 = vsel %vm389, %v390, %v273
      %v392 = vshrl.u32 %v391, 4
      %v393 = vand.u32 %v391, 15
      %v394 = vsub.s32 0, %v393
      %v395 = vsel %vm389, %v394, %v393
      %vm396 = vcmp.lt.s32.totalorder %v274, 0
      %v397 = vsub.s32 0, %v274
      %v398 = vsel %vm396, %v397, %v274
      %v399 = vshrl.u32 %v398, 4
      %v400 = vand.u32 %v398, 15
      %v401 = vsub.s32 0, %v400
      %v402 = vsel %vm396, %v401, %v400
      %vm403 = vcmp.lt.s32.totalorder %v275, 0
      %v404 = vsub.s32 0, %v275
      %v405 = vsel %vm403, %v404, %v275
      %v406 = vshrl.u32 %v405, 4
      %v407 = vand.u32 %v405, 15
      %v408 = vsub.s32 0, %v407
      %v409 = vsel %vm403, %v408, %v407
      %vm410 = vcmp.lt.s32.totalorder %v276, 0
      %v411 = vsub.s32 0, %v276
      %v412 = vsel %vm410, %v411, %v276
      %v413 = vshrl.u32 %v412, 4
      %v414 = vand.u32 %v412, 15
      %v415 = vsub.s32 0, %v414
      %v416 = vsel %vm410, %v415, %v414
      %vm417 = vcmp.lt.s32.totalorder %v277, 0
      %v418 = vsub.s32 0, %v277
      %v419 = vsel %vm417, %v418, %v277
      %v420 = vshrl.u32 %v419, 4
      %v421 = vand.u32 %v419, 15
      %v422 = vsub.s32 0, %v421
      %v423 = vsel %vm417, %v422, %v421
      %vm424 = vcmp.lt.s32.totalorder %v278, 0
      %v425 = vsub.s32 0, %v278
      %v426 = vsel %vm424, %v425, %v278
      %v427 = vshrl.u32 %v426, 4
      %v428 = vand.u32 %v426, 15
      %v429 = vsub.s32 0, %v428
      %v430 = vsel %vm424, %v429, %v428
      %vm431 = vcmp.lt.s32.totalorder %v279, 0
      %v432 = vsub.s32 0, %v279
      %v433 = vsel %vm431, %v432, %v279
      %v434 = vshrl.u32 %v433, 4
      %v435 = vand.u32 %v433, 15
      %v436 = vsub.s32 0, %v435
      %v437 = vsel %vm431, %v436, %v435
      %vm438 = vcmp.lt.s32.totalorder %v280, 0
      %v439 = vsub.s32 0, %v280
      %v440 = vsel %vm438, %v439, %v280
      %v441 = vshrl.u32 %v440, 4
      %v442 = vand.u32 %v440, 15
      %v443 = vsub.s32 0, %v442
      %v444 = vsel %vm438, %v443, %v442
      %vm445 = vcmp.lt.s32.totalorder %v281, 0
      %v446 = vsub.s32 0, %v281
      %v447 = vsel %vm445, %v446, %v281
      %v448 = vshrl.u32 %v447, 4
      %v449 = vand.u32 %v447, 15
      %v450 = vsub.s32 0, %v449
      %v451 = vsel %vm445, %v450, %v449
      %vm452 = vcmp.lt.s32.totalorder %v282, 0
      %v453 = vsub.s32 0, %v282
      %v454 = vsel %vm452, %v453, %v282
      %v455 = vshrl.u32 %v454, 4
      %v456 = vand.u32 %v454, 15
      %v457 = vsub.s32 0, %v456
      %v458 = vsel %vm452, %v457, %v456
      %vm459 = vcmp.lt.s32.totalorder %v283, 0
      %v460 = vsub.s32 0, %v283
      %v461 = vsel %vm459, %v460, %v283
      %v462 = vshrl.u32 %v461, 4
      %v463 = vand.u32 %v461, 15
      %v464 = vsub.s32 0, %v463
      %v465 = vsel %vm459, %v464, %v463
      %vm466 = vcmp.lt.s32.totalorder %v284, 0
      %v467 = vsub.s32 0, %v284
      %v468 = vsel %vm466, %v467, %v284
      %v469 = vshrl.u32 %v468, 4
      %v470 = vand.u32 %v468, 15
      %v471 = vsub.s32 0, %v470
      %v472 = vsel %vm466, %v471, %v470
      %vm473 = vcmp.lt.s32.totalorder %v285, 0
      %v474 = vsub.s32 0, %v285
      %v475 = vsel %vm473, %v474, %v285
      %v476 = vshrl.u32 %v475, 4
      %v477 = vand.u32 %v475, 15
      %v478 = vsub.s32 0, %v477
      %v479 = vsel %vm473, %v478, %v477
      %vm480 = vcmp.lt.s32.totalorder %v286, 0
      %v481 = vsub.s32 0, %v286
      %v482 = vsel %vm480, %v481, %v286
      %v483 = vshrl.u32 %v482, 4
      %v484 = vand.u32 %v482, 15
      %v485 = vsub.s32 0, %v484
      %v486 = vsel %vm480, %v485, %v484
      %vm487 = vcmp.lt.s32.totalorder %v287, 0
      %v488 = vsub.s32 0, %v287
      %v489 = vsel %vm487, %v488, %v287
      %v490 = vshrl.u32 %v489, 4
      %v491 = vand.u32 %v489, 15
      %v492 = vsub.s32 0, %v491
      %v493 = vsel %vm487, %v492, %v491
      %vm494 = vcmp.lt.s32.totalorder %v288, 0
      %v495 = vsub.s32 0, %v288
      %v496 = vsel %vm494, %v495, %v288
      %v497 = vshrl.u32 %v496, 4
      %v498 = vand.u32 %v496, 15
      %v499 = vsub.s32 0, %v498
      %v500 = vsel %vm494, %v499, %v498
      %vm501 = vcmp.lt.s32.totalorder %v289, 0
      %v502 = vsub.s32 0, %v289
      %v503 = vsel %vm501, %v502, %v289
      %v504 = vshrl.u32 %v503, 4
      %v505 = vand.u32 %v503, 15
      %v506 = vsub.s32 0, %v505
      %v507 = vsel %vm501, %v506, %v505
      %vm508 = vcmp.lt.s32.totalorder %v290, 0
      %v509 = vsub.s32 0, %v290
      %v510 = vsel %vm508, %v509, %v290
      %v511 = vshrl.u32 %v510, 4
      %v512 = vand.u32 %v510, 15
      %v513 = vsub.s32 0, %v512
      %v514 = vsel %vm508, %v513, %v512
      %vm515 = vcmp.ne.s32.totalorder %v297, 0
      %vm516 = vcmp.ne.s32.totalorder %v304, 0
      %vm517 = vcmp.ne.s32.totalorder %v311, 0
      %vm518 = vcmp.ne.s32.totalorder %v318, 0
      %vm519 = vcmp.ne.s32.totalorder %v325, 0
      %vm520 = vcmp.ne.s32.totalorder %v332, 0
      %vm521 = vcmp.ne.s32.totalorder %v339, 0
      %vm522 = vcmp.ne.s32.totalorder %v346, 0
      %vm523 = vcmp.ne.s32.totalorder %v353, 0
      %vm524 = vcmp.ne.s32.totalorder %v360, 0
      %vm525 = vcmp.ne.s32.totalorder %v367, 0
      %vm526 = vcmp.ne.s32.totalorder %v374, 0
      %vm527 = vcmp.ne.s32.totalorder %v381, 0
      %vm528 = vcmp.ne.s32.totalorder %v388, 0
      %vm529 = vcmp.ne.s32.totalorder %v395, 0
      %vm530 = vcmp.ne.s32.totalorder %v402, 0
      %vm531 = vcmp.ne.s32.totalorder %v409, 0
      %vm532 = vcmp.ne.s32.totalorder %v416, 0
      %vm533 = vcmp.ne.s32.totalorder %v423, 0
      %vm534 = vcmp.ne.s32.totalorder %v430, 0
      %vm535 = vcmp.ne.s32.totalorder %v437, 0
      %vm536 = vcmp.ne.s32.totalorder %v444, 0
      %vm537 = vcmp.ne.s32.totalorder %v451, 0
      %vm538 = vcmp.ne.s32.totalorder %v458, 0
      %vm539 = vcmp.ne.s32.totalorder %v465, 0
      %vm540 = vcmp.ne.s32.totalorder %v472, 0
      %vm541 = vcmp.ne.s32.totalorder %v479, 0
      %vm542 = vcmp.ne.s32.totalorder %v486, 0
      %vm543 = vcmp.ne.s32.totalorder %v493, 0
      %vm544 = vcmp.ne.s32.totalorder %v500, 0
      %vm545 = vcmp.ne.s32.totalorder %v507, 0
      %vm546 = vcmp.ne.s32.totalorder %v514, 0
      %vm547 = vcmp.lt.s32.totalorder %v297, 0
      %vm548 = vcmp.lt.s32.totalorder %v304, 0
      %vm549 = vcmp.lt.s32.totalorder %v311, 0
      %vm550 = vcmp.lt.s32.totalorder %v318, 0
      %vm551 = vcmp.lt.s32.totalorder %v325, 0
      %vm552 = vcmp.lt.s32.totalorder %v332, 0
      %vm553 = vcmp.lt.s32.totalorder %v339, 0
      %vm554 = vcmp.lt.s32.totalorder %v346, 0
      %vm555 = vcmp.lt.s32.totalorder %v353, 0
      %vm556 = vcmp.lt.s32.totalorder %v360, 0
      %vm557 = vcmp.lt.s32.totalorder %v367, 0
      %vm558 = vcmp.lt.s32.totalorder %v374, 0
      %vm559 = vcmp.lt.s32.totalorder %v381, 0
      %vm560 = vcmp.lt.s32.totalorder %v388, 0
      %vm561 = vcmp.lt.s32.totalorder %v395, 0
      %vm562 = vcmp.lt.s32.totalorder %v402, 0
      %vm563 = vcmp.lt.s32.totalorder %v409, 0
      %vm564 = vcmp.lt.s32.totalorder %v416, 0
      %vm565 = vcmp.lt.s32.totalorder %v423, 0
      %vm566 = vcmp.lt.s32.totalorder %v430, 0
      %vm567 = vcmp.lt.s32.totalorder %v437, 0
      %vm568 = vcmp.lt.s32.totalorder %v444, 0
      %vm569 = vcmp.lt.s32.totalorder %v451, 0
      %vm570 = vcmp.lt.s32.totalorder %v458, 0
      %vm571 = vcmp.lt.s32.totalorder %v465, 0
      %vm572 = vcmp.lt.s32.totalorder %v472, 0
      %vm573 = vcmp.lt.s32.totalorder %v479, 0
      %vm574 = vcmp.lt.s32.totalorder %v486, 0
      %vm575 = vcmp.lt.s32.totalorder %v493, 0
      %vm576 = vcmp.lt.s32.totalorder %v500, 0
      %vm577 = vcmp.lt.s32.totalorder %v507, 0
      %vm578 = vcmp.lt.s32.totalorder %v514, 0
      %vm579 = vmand %vm547, %vm515
      %vm580 = vmand %vm548, %vm516
      %vm581 = vmand %vm549, %vm517
      %vm582 = vmand %vm550, %vm518
      %vm583 = vmand %vm551, %vm519
      %vm584 = vmand %vm552, %vm520
      %vm585 = vmand %vm553, %vm521
      %vm586 = vmand %vm554, %vm522
      %vm587 = vmand %vm555, %vm523
      %vm588 = vmand %vm556, %vm524
      %vm589 = vmand %vm557, %vm525
      %vm590 = vmand %vm558, %vm526
      %vm591 = vmand %vm559, %vm527
      %vm592 = vmand %vm560, %vm528
      %vm593 = vmand %vm561, %vm529
      %vm594 = vmand %vm562, %vm530
      %vm595 = vmand %vm563, %vm531
      %vm596 = vmand %vm564, %vm532
      %vm597 = vmand %vm565, %vm533
      %vm598 = vmand %vm566, %vm534
      %vm599 = vmand %vm567, %vm535
      %vm600 = vmand %vm568, %vm536
      %vm601 = vmand %vm569, %vm537
      %vm602 = vmand %vm570, %vm538
      %vm603 = vmand %vm571, %vm539
      %vm604 = vmand %vm572, %vm540
      %vm605 = vmand %vm573, %vm541
      %vm606 = vmand %vm574, %vm542
      %vm607 = vmand %vm575, %vm543
      %vm608 = vmand %vm576, %vm544
      %vm609 = vmand %vm577, %vm545
      %vm610 = vmand %vm578, %vm546
      %v611 = vadd.s32 %v297, 16
      %v612 = vadd.s32 %v304, 16
      %v613 = vadd.s32 %v311, 16
      %v614 = vadd.s32 %v318, 16
      %v615 = vadd.s32 %v325, 16
      %v616 = vadd.s32 %v332, 16
      %v617 = vadd.s32 %v339, 16
      %v618 = vadd.s32 %v346, 16
      %v619 = vadd.s32 %v353, 16
      %v620 = vadd.s32 %v360, 16
      %v621 = vadd.s32 %v367, 16
      %v622 = vadd.s32 %v374, 16
      %v623 = vadd.s32 %v381, 16
      %v624 = vadd.s32 %v388, 16
      %v625 = vadd.s32 %v395, 16
      %v626 = vadd.s32 %v402, 16
      %v627 = vadd.s32 %v409, 16
      %v628 = vadd.s32 %v416, 16
      %v629 = vadd.s32 %v423, 16
      %v630 = vadd.s32 %v430, 16
      %v631 = vadd.s32 %v437, 16
      %v632 = vadd.s32 %v444, 16
      %v633 = vadd.s32 %v451, 16
      %v634 = vadd.s32 %v458, 16
      %v635 = vadd.s32 %v465, 16
      %v636 = vadd.s32 %v472, 16
      %v637 = vadd.s32 %v479, 16
      %v638 = vadd.s32 %v486, 16
      %v639 = vadd.s32 %v493, 16
      %v640 = vadd.s32 %v500, 16
      %v641 = vadd.s32 %v507, 16
      %v642 = vadd.s32 %v514, 16
      %v643 = vsel %vm579, %v611, %v297
      %v644 = vsel %vm580, %v612, %v304
      %v645 = vsel %vm581, %v613, %v311
      %v646 = vsel %vm582, %v614, %v318
      %v647 = vsel %vm583, %v615, %v325
      %v648 = vsel %vm584, %v616, %v332
      %v649 = vsel %vm585, %v617, %v339
      %v650 = vsel %vm586, %v618, %v346
      %v651 = vsel %vm587, %v619, %v353
      %v652 = vsel %vm588, %v620, %v360
      %v653 = vsel %vm589, %v621, %v367
      %v654 = vsel %vm590, %v622, %v374
      %v655 = vsel %vm591, %v623, %v381
      %v656 = vsel %vm592, %v624, %v388
      %v657 = vsel %vm593, %v625, %v395
      %v658 = vsel %vm594, %v626, %v402
      %v659 = vsel %vm595, %v627, %v409
      %v660 = vsel %vm596, %v628, %v416
      %v661 = vsel %vm597, %v629, %v423
      %v662 = vsel %vm598, %v630, %v430
      %v663 = vsel %vm599, %v631, %v437
      %v664 = vsel %vm600, %v632, %v444
      %v665 = vsel %vm601, %v633, %v451
      %v666 = vsel %vm602, %v634, %v458
      %v667 = vsel %vm603, %v635, %v465
      %v668 = vsel %vm604, %v636, %v472
      %v669 = vsel %vm605, %v637, %v479
      %v670 = vsel %vm606, %v638, %v486
      %v671 = vsel %vm607, %v639, %v493
      %v672 = vsel %vm608, %v640, %v500
      %v673 = vsel %vm609, %v641, %v507
      %v674 = vsel %vm610, %v642, %v514
      %vm675 = vcmp.gt.s32.totalorder %v643, 0
      %vm676 = vcmp.gt.s32.totalorder %v644, 0
      %vm677 = vcmp.gt.s32.totalorder %v645, 0
      %vm678 = vcmp.gt.s32.totalorder %v646, 0
      %vm679 = vcmp.gt.s32.totalorder %v647, 0
      %vm680 = vcmp.gt.s32.totalorder %v648, 0
      %vm681 = vcmp.gt.s32.totalorder %v649, 0
      %vm682 = vcmp.gt.s32.totalorder %v650, 0
      %vm683 = vcmp.gt.s32.totalorder %v651, 0
      %vm684 = vcmp.gt.s32.totalorder %v652, 0
      %vm685 = vcmp.gt.s32.totalorder %v653, 0
      %vm686 = vcmp.gt.s32.totalorder %v654, 0
      %vm687 = vcmp.gt.s32.totalorder %v655, 0
      %vm688 = vcmp.gt.s32.totalorder %v656, 0
      %vm689 = vcmp.gt.s32.totalorder %v657, 0
      %vm690 = vcmp.gt.s32.totalorder %v658, 0
      %vm691 = vcmp.gt.s32.totalorder %v659, 0
      %vm692 = vcmp.gt.s32.totalorder %v660, 0
      %vm693 = vcmp.gt.s32.totalorder %v661, 0
      %vm694 = vcmp.gt.s32.totalorder %v662, 0
      %vm695 = vcmp.gt.s32.totalorder %v663, 0
      %vm696 = vcmp.gt.s32.totalorder %v664, 0
      %vm697 = vcmp.gt.s32.totalorder %v665, 0
      %vm698 = vcmp.gt.s32.totalorder %v666, 0
      %vm699 = vcmp.gt.s32.totalorder %v667, 0
      %vm700 = vcmp.gt.s32.totalorder %v668, 0
      %vm701 = vcmp.gt.s32.totalorder %v669, 0
      %vm702 = vcmp.gt.s32.totalorder %v670, 0
      %vm703 = vcmp.gt.s32.totalorder %v671, 0
      %vm704 = vcmp.gt.s32.totalorder %v672, 0
      %vm705 = vcmp.gt.s32.totalorder %v673, 0
      %vm706 = vcmp.gt.s32.totalorder %v674, 0
      %v707 = vsel %vm675, 1, 0
      %v708 = vsel %vm676, 1, 0
      %v709 = vsel %vm677, 1, 0
      %v710 = vsel %vm678, 1, 0
      %v711 = vsel %vm679, 1, 0
      %v712 = vsel %vm680, 1, 0
      %v713 = vsel %vm681, 1, 0
      %v714 = vsel %vm682, 1, 0
      %v715 = vsel %vm683, 1, 0
      %v716 = vsel %vm684, 1, 0
      %v717 = vsel %vm685, 1, 0
      %v718 = vsel %vm686, 1, 0
      %v719 = vsel %vm687, 1, 0
      %v720 = vsel %vm688, 1, 0
      %v721 = vsel %vm689, 1, 0
      %v722 = vsel %vm690, 1, 0
      %v723 = vsel %vm691, 1, 0
      %v724 = vsel %vm692, 1, 0
      %v725 = vsel %vm693, 1, 0
      %v726 = vsel %vm694, 1, 0
      %v727 = vsel %vm695, 1, 0
      %v728 = vsel %vm696, 1, 0
      %v729 = vsel %vm697, 1, 0
      %v730 = vsel %vm698, 1, 0
      %v731 = vsel %vm699, 1, 0
      %v732 = vsel %vm700, 1, 0
      %v733 = vsel %vm701, 1, 0
      %v734 = vsel %vm702, 1, 0
      %v735 = vsel %vm703, 1, 0
      %v736 = vsel %vm704, 1, 0
      %v737 = vsel %vm705, 1, 0
      %v738 = vsel %vm706, 1, 0
      %vm739 = vcmp.eq.s32.totalorder %v707, 1
      %vm740 = vcmp.eq.s32.totalorder %v708, 1
      %vm741 = vcmp.eq.s32.totalorder %v709, 1
      %vm742 = vcmp.eq.s32.totalorder %v710, 1
      %vm743 = vcmp.eq.s32.totalorder %v711, 1
      %vm744 = vcmp.eq.s32.totalorder %v712, 1
      %vm745 = vcmp.eq.s32.totalorder %v713, 1
      %vm746 = vcmp.eq.s32.totalorder %v714, 1
      %vm747 = vcmp.eq.s32.totalorder %v715, 1
      %vm748 = vcmp.eq.s32.totalorder %v716, 1
      %vm749 = vcmp.eq.s32.totalorder %v717, 1
      %vm750 = vcmp.eq.s32.totalorder %v718, 1
      %vm751 = vcmp.eq.s32.totalorder %v719, 1
      %vm752 = vcmp.eq.s32.totalorder %v720, 1
      %vm753 = vcmp.eq.s32.totalorder %v721, 1
      %vm754 = vcmp.eq.s32.totalorder %v722, 1
      %vm755 = vcmp.eq.s32.totalorder %v723, 1
      %vm756 = vcmp.eq.s32.totalorder %v724, 1
      %vm757 = vcmp.eq.s32.totalorder %v725, 1
      %vm758 = vcmp.eq.s32.totalorder %v726, 1
      %vm759 = vcmp.eq.s32.totalorder %v727, 1
      %vm760 = vcmp.eq.s32.totalorder %v728, 1
      %vm761 = vcmp.eq.s32.totalorder %v729, 1
      %vm762 = vcmp.eq.s32.totalorder %v730, 1
      %vm763 = vcmp.eq.s32.totalorder %v731, 1
      %vm764 = vcmp.eq.s32.totalorder %v732, 1
      %vm765 = vcmp.eq.s32.totalorder %v733, 1
      %vm766 = vcmp.eq.s32.totalorder %v734, 1
      %vm767 = vcmp.eq.s32.totalorder %v735, 1
      %vm768 = vcmp.eq.s32.totalorder %v736, 1
      %vm769 = vcmp.eq.s32.totalorder %v737, 1
      %vm770 = vcmp.eq.s32.totalorder %v738, 1
      %vm771 = vcmp.lt.s32.totalorder %v643, 15
      %vm772 = vcmp.lt.s32.totalorder %v644, 15
      %vm773 = vcmp.lt.s32.totalorder %v645, 15
      %vm774 = vcmp.lt.s32.totalorder %v646, 15
      %vm775 = vcmp.lt.s32.totalorder %v647, 15
      %vm776 = vcmp.lt.s32.totalorder %v648, 15
      %vm777 = vcmp.lt.s32.totalorder %v649, 15
      %vm778 = vcmp.lt.s32.totalorder %v650, 15
      %vm779 = vcmp.lt.s32.totalorder %v651, 15
      %vm780 = vcmp.lt.s32.totalorder %v652, 15
      %vm781 = vcmp.lt.s32.totalorder %v653, 15
      %vm782 = vcmp.lt.s32.totalorder %v654, 15
      %vm783 = vcmp.lt.s32.totalorder %v655, 15
      %vm784 = vcmp.lt.s32.totalorder %v656, 15
      %vm785 = vcmp.lt.s32.totalorder %v657, 15
      %vm786 = vcmp.lt.s32.totalorder %v658, 15
      %vm787 = vcmp.lt.s32.totalorder %v659, 15
      %vm788 = vcmp.lt.s32.totalorder %v660, 15
      %vm789 = vcmp.lt.s32.totalorder %v661, 15
      %vm790 = vcmp.lt.s32.totalorder %v662, 15
      %vm791 = vcmp.lt.s32.totalorder %v663, 15
      %vm792 = vcmp.lt.s32.totalorder %v664, 15
      %vm793 = vcmp.lt.s32.totalorder %v665, 15
      %vm794 = vcmp.lt.s32.totalorder %v666, 15
      %vm795 = vcmp.lt.s32.totalorder %v667, 15
      %vm796 = vcmp.lt.s32.totalorder %v668, 15
      %vm797 = vcmp.lt.s32.totalorder %v669, 15
      %vm798 = vcmp.lt.s32.totalorder %v670, 15
      %vm799 = vcmp.lt.s32.totalorder %v671, 15
      %vm800 = vcmp.lt.s32.totalorder %v672, 15
      %vm801 = vcmp.lt.s32.totalorder %v673, 15
      %vm802 = vcmp.lt.s32.totalorder %v674, 15
      %v803 = vsel %vm771, 1, 0
      %v804 = vsel %vm772, 1, 0
      %v805 = vsel %vm773, 1, 0
      %v806 = vsel %vm774, 1, 0
      %v807 = vsel %vm775, 1, 0
      %v808 = vsel %vm776, 1, 0
      %v809 = vsel %vm777, 1, 0
      %v810 = vsel %vm778, 1, 0
      %v811 = vsel %vm779, 1, 0
      %v812 = vsel %vm780, 1, 0
      %v813 = vsel %vm781, 1, 0
      %v814 = vsel %vm782, 1, 0
      %v815 = vsel %vm783, 1, 0
      %v816 = vsel %vm784, 1, 0
      %v817 = vsel %vm785, 1, 0
      %v818 = vsel %vm786, 1, 0
      %v819 = vsel %vm787, 1, 0
      %v820 = vsel %vm788, 1, 0
      %v821 = vsel %vm789, 1, 0
      %v822 = vsel %vm790, 1, 0
      %v823 = vsel %vm791, 1, 0
      %v824 = vsel %vm792, 1, 0
      %v825 = vsel %vm793, 1, 0
      %v826 = vsel %vm794, 1, 0
      %v827 = vsel %vm795, 1, 0
      %v828 = vsel %vm796, 1, 0
      %v829 = vsel %vm797, 1, 0
      %v830 = vsel %vm798, 1, 0
      %v831 = vsel %vm799, 1, 0
      %v832 = vsel %vm800, 1, 0
      %v833 = vsel %vm801, 1, 0
      %v834 = vsel %vm802, 1, 0
      %vm835 = vcmp.eq.s32.totalorder %v803, 1
      %vm836 = vcmp.eq.s32.totalorder %v804, 1
      %vm837 = vcmp.eq.s32.totalorder %v805, 1
      %vm838 = vcmp.eq.s32.totalorder %v806, 1
      %vm839 = vcmp.eq.s32.totalorder %v807, 1
      %vm840 = vcmp.eq.s32.totalorder %v808, 1
      %vm841 = vcmp.eq.s32.totalorder %v809, 1
      %vm842 = vcmp.eq.s32.totalorder %v810, 1
      %vm843 = vcmp.eq.s32.totalorder %v811, 1
      %vm844 = vcmp.eq.s32.totalorder %v812, 1
      %vm845 = vcmp.eq.s32.totalorder %v813, 1
      %vm846 = vcmp.eq.s32.totalorder %v814, 1
      %vm847 = vcmp.eq.s32.totalorder %v815, 1
      %vm848 = vcmp.eq.s32.totalorder %v816, 1
      %vm849 = vcmp.eq.s32.totalorder %v817, 1
      %vm850 = vcmp.eq.s32.totalorder %v818, 1
      %vm851 = vcmp.eq.s32.totalorder %v819, 1
      %vm852 = vcmp.eq.s32.totalorder %v820, 1
      %vm853 = vcmp.eq.s32.totalorder %v821, 1
      %vm854 = vcmp.eq.s32.totalorder %v822, 1
      %vm855 = vcmp.eq.s32.totalorder %v823, 1
      %vm856 = vcmp.eq.s32.totalorder %v824, 1
      %vm857 = vcmp.eq.s32.totalorder %v825, 1
      %vm858 = vcmp.eq.s32.totalorder %v826, 1
      %vm859 = vcmp.eq.s32.totalorder %v827, 1
      %vm860 = vcmp.eq.s32.totalorder %v828, 1
      %vm861 = vcmp.eq.s32.totalorder %v829, 1
      %vm862 = vcmp.eq.s32.totalorder %v830, 1
      %vm863 = vcmp.eq.s32.totalorder %v831, 1
      %vm864 = vcmp.eq.s32.totalorder %v832, 1
      %vm865 = vcmp.eq.s32.totalorder %v833, 1
      %vm866 = vcmp.eq.s32.totalorder %v834, 1
      %vm899 = vcmask 1040384
      %v900 = vrot.slane %v226, 7
      %v901 = vrot.slane %v227, 7
      %v902 = vsel %vm899, %v900, %v901
      %v903 = vrot.slane %v228, 7
      %v904 = vsel %vm899, %v901, %v903
      %v905 = vrot.slane %v229, 7
      %v906 = vsel %vm899, %v903, %v905
      %v907 = vrot.slane %v230, 7
      %v908 = vsel %vm899, %v905, %v907
      %v909 = vrot.slane %v231, 7
      %v910 = vsel %vm899, %v907, %v909
      %v911 = vrot.slane %v232, 7
      %v912 = vsel %vm899, %v909, %v911
      %v913 = vrot.slane %v233, 7
      %v914 = vsel %vm899, %v911, %v913
      %v915 = vrot.slane %v234, 7
      %v916 = vsel %vm899, %v913, %v915
      %v917 = vrot.slane %v235, 7
      %v918 = vsel %vm899, %v915, %v917
      %v919 = vrot.slane %v236, 7
      %v920 = vsel %vm899, %v917, %v919
      %v921 = vrot.slane %v237, 7
      %v922 = vsel %vm899, %v919, %v921
      %v923 = vrot.slane %v238, 7
      %v924 = vsel %vm899, %v921, %v923
      %v925 = vrot.slane %v239, 7
      %v926 = vsel %vm899, %v923, %v925
      %v927 = vrot.slane %v240, 7
      %v928 = vsel %vm899, %v925, %v927
      %v929 = vrot.slane %v241, 7
      %v930 = vsel %vm899, %v927, %v929
      %v931 = vrot.slane %v242, 7
      %v932 = vsel %vm899, %v929, %v931
      %v933 = vrot.slane %v243, 7
      %v934 = vsel %vm899, %v931, %v933
      %v935 = vrot.slane %v244, 7
      %v936 = vsel %vm899, %v933, %v935
      %v937 = vrot.slane %v245, 7
      %v938 = vsel %vm899, %v935, %v937
      %v939 = vrot.slane %v246, 7
      %v940 = vsel %vm899, %v937, %v939
      %v941 = vrot.slane %v247, 7
      %v942 = vsel %vm899, %v939, %v941
      %v943 = vrot.slane %v248, 7
      %v944 = vsel %vm899, %v941, %v943
      %v945 = vrot.slane %v249, 7
      %v946 = vsel %vm899, %v943, %v945
      %v947 = vrot.slane %v250, 7
      %v948 = vsel %vm899, %v945, %v947
      %v949 = vrot.slane %v251, 7
      %v950 = vsel %vm899, %v947, %v949
      %v951 = vrot.slane %v252, 7
      %v952 = vsel %vm899, %v949, %v951
      %v953 = vrot.slane %v253, 7
      %v954 = vsel %vm899, %v951, %v953
      %v955 = vrot.slane %v254, 7
      %v956 = vsel %vm899, %v953, %v955
      %v957 = vrot.slane %v255, 7
      %v958 = vsel %vm899, %v955, %v957
      %v959 = vrot.slane %v256, 7
      %v960 = vsel %vm899, %v957, %v959
      %v961 = vrot.slane %v257, 7
      %v962 = vsel %vm899, %v959, %v961
      %v995 = vsel %vm899, 0.0, %v900
      %v996 = vsel %vm739, %v995, 0.0
      %v997 = vsel %vm740, %v902, 0.0
      %v998 = vsel %vm741, %v904, 0.0
      %v999 = vsel %vm742, %v906, 0.0
      %v1000 = vsel %vm743, %v908, 0.0
      %v1001 = vsel %vm744, %v910, 0.0
      %v1002 = vsel %vm745, %v912, 0.0
      %v1003 = vsel %vm746, %v914, 0.0
      %v1004 = vsel %vm747, %v916, 0.0
      %v1005 = vsel %vm748, %v918, 0.0
      %v1006 = vsel %vm749, %v920, 0.0
      %v1007 = vsel %vm750, %v922, 0.0
      %v1008 = vsel %vm751, %v924, 0.0
      %v1009 = vsel %vm752, %v926, 0.0
      %v1010 = vsel %vm753, %v928, 0.0
      %v1011 = vsel %vm754, %v930, 0.0
      %v1012 = vsel %vm755, %v932, 0.0
      %v1013 = vsel %vm756, %v934, 0.0
      %v1014 = vsel %vm757, %v936, 0.0
      %v1015 = vsel %vm758, %v938, 0.0
      %v1016 = vsel %vm759, %v940, 0.0
      %v1017 = vsel %vm760, %v942, 0.0
      %v1018 = vsel %vm761, %v944, 0.0
      %v1019 = vsel %vm762, %v946, 0.0
      %v1020 = vsel %vm763, %v948, 0.0
      %v1021 = vsel %vm764, %v950, 0.0
      %v1022 = vsel %vm765, %v952, 0.0
      %v1023 = vsel %vm766, %v954, 0.0
      %v1024 = vsel %vm767, %v956, 0.0
      %v1025 = vsel %vm768, %v958, 0.0
      %v1026 = vsel %vm769, %v960, 0.0
      %v1027 = vsel %vm770, %v962, 0.0
      %v1028 = vpack.c.bf16 %v996, %v996
      %v1029 = vpack.c.bf16 %v997, %v997
      %v1030 = vpack.c.bf16 %v998, %v998
      %v1031 = vpack.c.bf16 %v999, %v999
      %v1032 = vpack.c.bf16 %v1000, %v1000
      %v1033 = vpack.c.bf16 %v1001, %v1001
      %v1034 = vpack.c.bf16 %v1002, %v1002
      %v1035 = vpack.c.bf16 %v1003, %v1003
      %v1036 = vpack.c.bf16 %v1004, %v1004
      %v1037 = vpack.c.bf16 %v1005, %v1005
      %v1038 = vpack.c.bf16 %v1006, %v1006
      %v1039 = vpack.c.bf16 %v1007, %v1007
      %v1040 = vpack.c.bf16 %v1008, %v1008
      %v1041 = vpack.c.bf16 %v1009, %v1009
      %v1042 = vpack.c.bf16 %v1010, %v1010
      %v1043 = vpack.c.bf16 %v1011, %v1011
      %v1044 = vpack.c.bf16 %v1012, %v1012
      %v1045 = vpack.c.bf16 %v1013, %v1013
      %v1046 = vpack.c.bf16 %v1014, %v1014
      %v1047 = vpack.c.bf16 %v1015, %v1015
      %v1048 = vpack.c.bf16 %v1016, %v1016
      %v1049 = vpack.c.bf16 %v1017, %v1017
      %v1050 = vpack.c.bf16 %v1018, %v1018
      %v1051 = vpack.c.bf16 %v1019, %v1019
      %v1052 = vpack.c.bf16 %v1020, %v1020
      %v1053 = vpack.c.bf16 %v1021, %v1021
      %v1054 = vpack.c.bf16 %v1022, %v1022
      %v1055 = vpack.c.bf16 %v1023, %v1023
      %v1056 = vpack.c.bf16 %v1024, %v1024
      %v1057 = vpack.c.bf16 %v1025, %v1025
      %v1058 = vpack.c.bf16 %v1026, %v1026
      %v1059 = vpack.c.bf16 %v1027, %v1027
      %v1060 = vpack.c.bf16 %v226, %v226
      %v1061 = vpack.c.bf16 %v227, %v227
      %v1062 = vpack.c.bf16 %v228, %v228
      %v1063 = vpack.c.bf16 %v229, %v229
      %v1064 = vpack.c.bf16 %v230, %v230
      %v1065 = vpack.c.bf16 %v231, %v231
      %v1066 = vpack.c.bf16 %v232, %v232
      %v1067 = vpack.c.bf16 %v233, %v233
      %v1068 = vpack.c.bf16 %v234, %v234
      %v1069 = vpack.c.bf16 %v235, %v235
      %v1070 = vpack.c.bf16 %v236, %v236
      %v1071 = vpack.c.bf16 %v237, %v237
      %v1072 = vpack.c.bf16 %v238, %v238
      %v1073 = vpack.c.bf16 %v239, %v239
      %v1074 = vpack.c.bf16 %v240, %v240
      %v1075 = vpack.c.bf16 %v241, %v241
      %v1076 = vpack.c.bf16 %v242, %v242
      %v1077 = vpack.c.bf16 %v243, %v243
      %v1078 = vpack.c.bf16 %v244, %v244
      %v1079 = vpack.c.bf16 %v245, %v245
      %v1080 = vpack.c.bf16 %v246, %v246
      %v1081 = vpack.c.bf16 %v247, %v247
      %v1082 = vpack.c.bf16 %v248, %v248
      %v1083 = vpack.c.bf16 %v249, %v249
      %v1084 = vpack.c.bf16 %v250, %v250
      %v1085 = vpack.c.bf16 %v251, %v251
      %v1086 = vpack.c.bf16 %v252, %v252
      %v1087 = vpack.c.bf16 %v253, %v253
      %v1088 = vpack.c.bf16 %v254, %v254
      %v1089 = vpack.c.bf16 %v255, %v255
      %v1090 = vpack.c.bf16 %v256, %v256
      %v1091 = vpack.c.bf16 %v257, %v257
      %vm1092 = vcmask 1046528
      %v1093 = vrot.slane %v226, 1
      %v1094 = vrot.slane %v227, 1
      %v1095 = vsel %vm1092, %v1093, %v1094
      %v1096 = vrot.slane %v228, 1
      %v1097 = vsel %vm1092, %v1094, %v1096
      %v1098 = vrot.slane %v229, 1
      %v1099 = vsel %vm1092, %v1096, %v1098
      %v1100 = vrot.slane %v230, 1
      %v1101 = vsel %vm1092, %v1098, %v1100
      %v1102 = vrot.slane %v231, 1
      %v1103 = vsel %vm1092, %v1100, %v1102
      %v1104 = vrot.slane %v232, 1
      %v1105 = vsel %vm1092, %v1102, %v1104
      %v1106 = vrot.slane %v233, 1
      %v1107 = vsel %vm1092, %v1104, %v1106
      %v1108 = vrot.slane %v234, 1
      %v1109 = vsel %vm1092, %v1106, %v1108
      %v1110 = vrot.slane %v235, 1
      %v1111 = vsel %vm1092, %v1108, %v1110
      %v1112 = vrot.slane %v236, 1
      %v1113 = vsel %vm1092, %v1110, %v1112
      %v1114 = vrot.slane %v237, 1
      %v1115 = vsel %vm1092, %v1112, %v1114
      %v1116 = vrot.slane %v238, 1
      %v1117 = vsel %vm1092, %v1114, %v1116
      %v1118 = vrot.slane %v239, 1
      %v1119 = vsel %vm1092, %v1116, %v1118
      %v1120 = vrot.slane %v240, 1
      %v1121 = vsel %vm1092, %v1118, %v1120
      %v1122 = vrot.slane %v241, 1
      %v1123 = vsel %vm1092, %v1120, %v1122
      %v1124 = vrot.slane %v242, 1
      %v1125 = vsel %vm1092, %v1122, %v1124
      %v1126 = vrot.slane %v243, 1
      %v1127 = vsel %vm1092, %v1124, %v1126
      %v1128 = vrot.slane %v244, 1
      %v1129 = vsel %vm1092, %v1126, %v1128
      %v1130 = vrot.slane %v245, 1
      %v1131 = vsel %vm1092, %v1128, %v1130
      %v1132 = vrot.slane %v246, 1
      %v1133 = vsel %vm1092, %v1130, %v1132
      %v1134 = vrot.slane %v247, 1
      %v1135 = vsel %vm1092, %v1132, %v1134
      %v1136 = vrot.slane %v248, 1
      %v1137 = vsel %vm1092, %v1134, %v1136
      %v1138 = vrot.slane %v249, 1
      %v1139 = vsel %vm1092, %v1136, %v1138
      %v1140 = vrot.slane %v250, 1
      %v1141 = vsel %vm1092, %v1138, %v1140
      %v1142 = vrot.slane %v251, 1
      %v1143 = vsel %vm1092, %v1140, %v1142
      %v1144 = vrot.slane %v252, 1
      %v1145 = vsel %vm1092, %v1142, %v1144
      %v1146 = vrot.slane %v253, 1
      %v1147 = vsel %vm1092, %v1144, %v1146
      %v1148 = vrot.slane %v254, 1
      %v1149 = vsel %vm1092, %v1146, %v1148
      %v1150 = vrot.slane %v255, 1
      %v1151 = vsel %vm1092, %v1148, %v1150
      %v1152 = vrot.slane %v256, 1
      %v1153 = vsel %vm1092, %v1150, %v1152
      %v1154 = vrot.slane %v257, 1
      %v1155 = vsel %vm1092, %v1152, %v1154
      %v1188 = vsel %vm1092, %v1154, 0.0
      %v1189 = vsel %vm835, %v1095, 0.0
      %v1190 = vsel %vm836, %v1097, 0.0
      %v1191 = vsel %vm837, %v1099, 0.0
      %v1192 = vsel %vm838, %v1101, 0.0
      %v1193 = vsel %vm839, %v1103, 0.0
      %v1194 = vsel %vm840, %v1105, 0.0
      %v1195 = vsel %vm841, %v1107, 0.0
      %v1196 = vsel %vm842, %v1109, 0.0
      %v1197 = vsel %vm843, %v1111, 0.0
      %v1198 = vsel %vm844, %v1113, 0.0
      %v1199 = vsel %vm845, %v1115, 0.0
      %v1200 = vsel %vm846, %v1117, 0.0
      %v1201 = vsel %vm847, %v1119, 0.0
      %v1202 = vsel %vm848, %v1121, 0.0
      %v1203 = vsel %vm849, %v1123, 0.0
      %v1204 = vsel %vm850, %v1125, 0.0
      %v1205 = vsel %vm851, %v1127, 0.0
      %v1206 = vsel %vm852, %v1129, 0.0
      %v1207 = vsel %vm853, %v1131, 0.0
      %v1208 = vsel %vm854, %v1133, 0.0
      %v1209 = vsel %vm855, %v1135, 0.0
      %v1210 = vsel %vm856, %v1137, 0.0
      %v1211 = vsel %vm857, %v1139, 0.0
      %v1212 = vsel %vm858, %v1141, 0.0
      %v1213 = vsel %vm859, %v1143, 0.0
      %v1214 = vsel %vm860, %v1145, 0.0
      %v1215 = vsel %vm861, %v1147, 0.0
      %v1216 = vsel %vm862, %v1149, 0.0
      %v1217 = vsel %vm863, %v1151, 0.0
      %v1218 = vsel %vm864, %v1153, 0.0
      %v1219 = vsel %vm865, %v1155, 0.0
      %v1220 = vsel %vm866, %v1188, 0.0
      %v1221 = vpack.c.bf16 %v1189, %v1189
      %v1222 = vpack.c.bf16 %v1190, %v1190
      %v1223 = vpack.c.bf16 %v1191, %v1191
      %v1224 = vpack.c.bf16 %v1192, %v1192
      %v1225 = vpack.c.bf16 %v1193, %v1193
      %v1226 = vpack.c.bf16 %v1194, %v1194
      %v1227 = vpack.c.bf16 %v1195, %v1195
      %v1228 = vpack.c.bf16 %v1196, %v1196
      %v1229 = vpack.c.bf16 %v1197, %v1197
      %v1230 = vpack.c.bf16 %v1198, %v1198
      %v1231 = vpack.c.bf16 %v1199, %v1199
      %v1232 = vpack.c.bf16 %v1200, %v1200
      %v1233 = vpack.c.bf16 %v1201, %v1201
      %v1234 = vpack.c.bf16 %v1202, %v1202
      %v1235 = vpack.c.bf16 %v1203, %v1203
      %v1236 = vpack.c.bf16 %v1204, %v1204
      %v1237 = vpack.c.bf16 %v1205, %v1205
      %v1238 = vpack.c.bf16 %v1206, %v1206
      %v1239 = vpack.c.bf16 %v1207, %v1207
      %v1240 = vpack.c.bf16 %v1208, %v1208
      %v1241 = vpack.c.bf16 %v1209, %v1209
      %v1242 = vpack.c.bf16 %v1210, %v1210
      %v1243 = vpack.c.bf16 %v1211, %v1211
      %v1244 = vpack.c.bf16 %v1212, %v1212
      %v1245 = vpack.c.bf16 %v1213, %v1213
      %v1246 = vpack.c.bf16 %v1214, %v1214
      %v1247 = vpack.c.bf16 %v1215, %v1215
      %v1248 = vpack.c.bf16 %v1216, %v1216
      %v1249 = vpack.c.bf16 %v1217, %v1217
      %v1250 = vpack.c.bf16 %v1218, %v1218
      %v1251 = vpack.c.bf16 %v1219, %v1219
      %v1252 = vpack.c.bf16 %v1220, %v1220
      %v1285 = vunpack.c.l.b16 %v1028
      %v1286 = vunpack.c.l.b16 %v1029
      %v1287 = vunpack.c.l.b16 %v1030
      %v1288 = vunpack.c.l.b16 %v1031
      %v1289 = vunpack.c.l.b16 %v1032
      %v1290 = vunpack.c.l.b16 %v1033
      %v1291 = vunpack.c.l.b16 %v1034
      %v1292 = vunpack.c.l.b16 %v1035
      %v1293 = vunpack.c.l.b16 %v1036
      %v1294 = vunpack.c.l.b16 %v1037
      %v1295 = vunpack.c.l.b16 %v1038
      %v1296 = vunpack.c.l.b16 %v1039
      %v1297 = vunpack.c.l.b16 %v1040
      %v1298 = vunpack.c.l.b16 %v1041
      %v1299 = vunpack.c.l.b16 %v1042
      %v1300 = vunpack.c.l.b16 %v1043
      %v1301 = vunpack.c.l.b16 %v1044
      %v1302 = vunpack.c.l.b16 %v1045
      %v1303 = vunpack.c.l.b16 %v1046
      %v1304 = vunpack.c.l.b16 %v1047
      %v1305 = vunpack.c.l.b16 %v1048
      %v1306 = vunpack.c.l.b16 %v1049
      %v1307 = vunpack.c.l.b16 %v1050
      %v1308 = vunpack.c.l.b16 %v1051
      %v1309 = vunpack.c.l.b16 %v1052
      %v1310 = vunpack.c.l.b16 %v1053
      %v1311 = vunpack.c.l.b16 %v1054
      %v1312 = vunpack.c.l.b16 %v1055
      %v1313 = vunpack.c.l.b16 %v1056
      %v1314 = vunpack.c.l.b16 %v1057
      %v1315 = vunpack.c.l.b16 %v1058
      %v1316 = vunpack.c.l.b16 %v1059
      %v1317 = vpack.c.b16 %v1286, %v1285
      %v1318 = vpack.c.b16 %v1288, %v1287
      %v1319 = vpack.c.b16 %v1290, %v1289
      %v1320 = vpack.c.b16 %v1292, %v1291
      %v1321 = vpack.c.b16 %v1294, %v1293
      %v1322 = vpack.c.b16 %v1296, %v1295
      %v1323 = vpack.c.b16 %v1298, %v1297
      %v1324 = vpack.c.b16 %v1300, %v1299
      %v1325 = vpack.c.b16 %v1302, %v1301
      %v1326 = vpack.c.b16 %v1304, %v1303
      %v1327 = vpack.c.b16 %v1306, %v1305
      %v1328 = vpack.c.b16 %v1308, %v1307
      %v1329 = vpack.c.b16 %v1310, %v1309
      %v1330 = vpack.c.b16 %v1312, %v1311
      %v1331 = vpack.c.b16 %v1314, %v1313
      %v1332 = vpack.c.b16 %v1316, %v1315
      %v1365 = vunpack.c.l.b16 %v1060
      %v1366 = vunpack.c.l.b16 %v1061
      %v1367 = vunpack.c.l.b16 %v1062
      %v1368 = vunpack.c.l.b16 %v1063
      %v1369 = vunpack.c.l.b16 %v1064
      %v1370 = vunpack.c.l.b16 %v1065
      %v1371 = vunpack.c.l.b16 %v1066
      %v1372 = vunpack.c.l.b16 %v1067
      %v1373 = vunpack.c.l.b16 %v1068
      %v1374 = vunpack.c.l.b16 %v1069
      %v1375 = vunpack.c.l.b16 %v1070
      %v1376 = vunpack.c.l.b16 %v1071
      %v1377 = vunpack.c.l.b16 %v1072
      %v1378 = vunpack.c.l.b16 %v1073
      %v1379 = vunpack.c.l.b16 %v1074
      %v1380 = vunpack.c.l.b16 %v1075
      %v1381 = vunpack.c.l.b16 %v1076
      %v1382 = vunpack.c.l.b16 %v1077
      %v1383 = vunpack.c.l.b16 %v1078
      %v1384 = vunpack.c.l.b16 %v1079
      %v1385 = vunpack.c.l.b16 %v1080
      %v1386 = vunpack.c.l.b16 %v1081
      %v1387 = vunpack.c.l.b16 %v1082
      %v1388 = vunpack.c.l.b16 %v1083
      %v1389 = vunpack.c.l.b16 %v1084
      %v1390 = vunpack.c.l.b16 %v1085
      %v1391 = vunpack.c.l.b16 %v1086
      %v1392 = vunpack.c.l.b16 %v1087
      %v1393 = vunpack.c.l.b16 %v1088
      %v1394 = vunpack.c.l.b16 %v1089
      %v1395 = vunpack.c.l.b16 %v1090
      %v1396 = vunpack.c.l.b16 %v1091
      %v1397 = vpack.c.b16 %v1366, %v1365
      %v1398 = vpack.c.b16 %v1368, %v1367
      %v1399 = vpack.c.b16 %v1370, %v1369
      %v1400 = vpack.c.b16 %v1372, %v1371
      %v1401 = vpack.c.b16 %v1374, %v1373
      %v1402 = vpack.c.b16 %v1376, %v1375
      %v1403 = vpack.c.b16 %v1378, %v1377
      %v1404 = vpack.c.b16 %v1380, %v1379
      %v1405 = vpack.c.b16 %v1382, %v1381
      %v1406 = vpack.c.b16 %v1384, %v1383
      %v1407 = vpack.c.b16 %v1386, %v1385
      %v1408 = vpack.c.b16 %v1388, %v1387
      %v1409 = vpack.c.b16 %v1390, %v1389
      %v1410 = vpack.c.b16 %v1392, %v1391
      %v1411 = vpack.c.b16 %v1394, %v1393
      %v1412 = vpack.c.b16 %v1396, %v1395
      %1413 = vrot.lane.b32.xlu0 %v1397, 4
      %v1414 = vpop.permute.xlu0 %1413
      %1415 = vrot.lane.b32.xlu0 %v1398, 4
      %v1416 = vpop.permute.xlu0 %1415
      %1417 = vrot.lane.b32.xlu0 %v1399, 4
      %v1418 = vpop.permute.xlu0 %1417
      %1419 = vrot.lane.b32.xlu0 %v1400, 4
      %v1420 = vpop.permute.xlu0 %1419
      %1421 = vrot.lane.b32.xlu0 %v1401, 4
      %v1422 = vpop.permute.xlu0 %1421
      %1423 = vrot.lane.b32.xlu0 %v1402, 4
      %v1424 = vpop.permute.xlu0 %1423
      %1425 = vrot.lane.b32.xlu0 %v1403, 4
      %v1426 = vpop.permute.xlu0 %1425
      %1427 = vrot.lane.b32.xlu0 %v1404, 4
      %v1428 = vpop.permute.xlu0 %1427
      %1429 = vrot.lane.b32.xlu0 %v1405, 4
      %v1430 = vpop.permute.xlu0 %1429
      %1431 = vrot.lane.b32.xlu0 %v1406, 4
      %v1432 = vpop.permute.xlu0 %1431
      %1433 = vrot.lane.b32.xlu0 %v1407, 4
      %v1434 = vpop.permute.xlu0 %1433
      %1435 = vrot.lane.b32.xlu0 %v1408, 4
      %v1436 = vpop.permute.xlu0 %1435
      %1437 = vrot.lane.b32.xlu0 %v1409, 4
      %v1438 = vpop.permute.xlu0 %1437
      %1439 = vrot.lane.b32.xlu0 %v1410, 4
      %v1440 = vpop.permute.xlu0 %1439
      %1441 = vrot.lane.b32.xlu0 %v1411, 4
      %v1442 = vpop.permute.xlu0 %1441
      %1443 = vrot.lane.b32.xlu0 %v1412, 4
      %v1444 = vpop.permute.xlu0 %1443
      %v1477 = vunpack.c.l.b16 %v1221
      %v1478 = vunpack.c.l.b16 %v1222
      %v1479 = vunpack.c.l.b16 %v1223
      %v1480 = vunpack.c.l.b16 %v1224
      %v1481 = vunpack.c.l.b16 %v1225
      %v1482 = vunpack.c.l.b16 %v1226
      %v1483 = vunpack.c.l.b16 %v1227
      %v1484 = vunpack.c.l.b16 %v1228
      %v1485 = vunpack.c.l.b16 %v1229
      %v1486 = vunpack.c.l.b16 %v1230
      %v1487 = vunpack.c.l.b16 %v1231
      %v1488 = vunpack.c.l.b16 %v1232
      %v1489 = vunpack.c.l.b16 %v1233
      %v1490 = vunpack.c.l.b16 %v1234
      %v1491 = vunpack.c.l.b16 %v1235
      %v1492 = vunpack.c.l.b16 %v1236
      %v1493 = vunpack.c.l.b16 %v1237
      %v1494 = vunpack.c.l.b16 %v1238
      %v1495 = vunpack.c.l.b16 %v1239
      %v1496 = vunpack.c.l.b16 %v1240
      %v1497 = vunpack.c.l.b16 %v1241
      %v1498 = vunpack.c.l.b16 %v1242
      %v1499 = vunpack.c.l.b16 %v1243
      %v1500 = vunpack.c.l.b16 %v1244
      %v1501 = vunpack.c.l.b16 %v1245
      %v1502 = vunpack.c.l.b16 %v1246
      %v1503 = vunpack.c.l.b16 %v1247
      %v1504 = vunpack.c.l.b16 %v1248
      %v1505 = vunpack.c.l.b16 %v1249
      %v1506 = vunpack.c.l.b16 %v1250
      %v1507 = vunpack.c.l.b16 %v1251
      %v1508 = vunpack.c.l.b16 %v1252
      %v1509 = vpack.c.b16 %v1478, %v1477
      %v1510 = vpack.c.b16 %v1480, %v1479
      %v1511 = vpack.c.b16 %v1482, %v1481
      %v1512 = vpack.c.b16 %v1484, %v1483
      %v1513 = vpack.c.b16 %v1486, %v1485
      %v1514 = vpack.c.b16 %v1488, %v1487
      %v1515 = vpack.c.b16 %v1490, %v1489
      %v1516 = vpack.c.b16 %v1492, %v1491
      %v1517 = vpack.c.b16 %v1494, %v1493
      %v1518 = vpack.c.b16 %v1496, %v1495
      %v1519 = vpack.c.b16 %v1498, %v1497
      %v1520 = vpack.c.b16 %v1500, %v1499
      %v1521 = vpack.c.b16 %v1502, %v1501
      %v1522 = vpack.c.b16 %v1504, %v1503
      %v1523 = vpack.c.b16 %v1506, %v1505
      %v1524 = vpack.c.b16 %v1508, %v1507
      %1525 = vrot.lane.b32.xlu0 %v1509, 8
      %v1526 = vpop.permute.xlu0 %1525
      %1527 = vrot.lane.b32.xlu0 %v1510, 8
      %v1528 = vpop.permute.xlu0 %1527
      %1529 = vrot.lane.b32.xlu0 %v1511, 8
      %v1530 = vpop.permute.xlu0 %1529
      %1531 = vrot.lane.b32.xlu0 %v1512, 8
      %v1532 = vpop.permute.xlu0 %1531
      %1533 = vrot.lane.b32.xlu0 %v1513, 8
      %v1534 = vpop.permute.xlu0 %1533
      %1535 = vrot.lane.b32.xlu0 %v1514, 8
      %v1536 = vpop.permute.xlu0 %1535
      %1537 = vrot.lane.b32.xlu0 %v1515, 8
      %v1538 = vpop.permute.xlu0 %1537
      %1539 = vrot.lane.b32.xlu0 %v1516, 8
      %v1540 = vpop.permute.xlu0 %1539
      %1541 = vrot.lane.b32.xlu0 %v1517, 8
      %v1542 = vpop.permute.xlu0 %1541
      %1543 = vrot.lane.b32.xlu0 %v1518, 8
      %v1544 = vpop.permute.xlu0 %1543
      %1545 = vrot.lane.b32.xlu0 %v1519, 8
      %v1546 = vpop.permute.xlu0 %1545
      %1547 = vrot.lane.b32.xlu0 %v1520, 8
      %v1548 = vpop.permute.xlu0 %1547
      %1549 = vrot.lane.b32.xlu0 %v1521, 8
      %v1550 = vpop.permute.xlu0 %1549
      %1551 = vrot.lane.b32.xlu0 %v1522, 8
      %v1552 = vpop.permute.xlu0 %1551
      %1553 = vrot.lane.b32.xlu0 %v1523, 8
      %v1554 = vpop.permute.xlu0 %1553
      %1555 = vrot.lane.b32.xlu0 %v1524, 8
      %v1556 = vpop.permute.xlu0 %1555
      %vm1557 = vcmask 31744
      %v1560 = vsel %vm1557, %v1317, %v1414
      %v1563 = vsel %vm1557, %v1318, %v1416
      %v1566 = vsel %vm1557, %v1319, %v1418
      %v1569 = vsel %vm1557, %v1320, %v1420
      %v1572 = vsel %vm1557, %v1321, %v1422
      %v1575 = vsel %vm1557, %v1322, %v1424
      %v1578 = vsel %vm1557, %v1323, %v1426
      %v1581 = vsel %vm1557, %v1324, %v1428
      %v1584 = vsel %vm1557, %v1325, %v1430
      %v1587 = vsel %vm1557, %v1326, %v1432
      %v1590 = vsel %vm1557, %v1327, %v1434
      %v1593 = vsel %vm1557, %v1328, %v1436
      %v1596 = vsel %vm1557, %v1329, %v1438
      %v1599 = vsel %vm1557, %v1330, %v1440
      %v1602 = vsel %vm1557, %v1331, %v1442
      %v1605 = vsel %vm1557, %v1332, %v1444
      %vm1606 = vcmask 64512
      %v1608 = vsel %vm1606, %v1560, %v1526
      %v1610 = vsel %vm1606, %v1563, %v1528
      %v1612 = vsel %vm1606, %v1566, %v1530
      %v1614 = vsel %vm1606, %v1569, %v1532
      %v1616 = vsel %vm1606, %v1572, %v1534
      %v1618 = vsel %vm1606, %v1575, %v1536
      %v1620 = vsel %vm1606, %v1578, %v1538
      %v1622 = vsel %vm1606, %v1581, %v1540
      %v1624 = vsel %vm1606, %v1584, %v1542
      %v1626 = vsel %vm1606, %v1587, %v1544
      %v1628 = vsel %vm1606, %v1590, %v1546
      %v1630 = vsel %vm1606, %v1593, %v1548
      %v1632 = vsel %vm1606, %v1596, %v1550
      %v1634 = vsel %vm1606, %v1599, %v1552
      %v1636 = vsel %vm1606, %v1602, %v1554
      %v1638 = vsel %vm1606, %v1605, %v1556
      %v1639 = vld [vmem:[%s1] sm:$0xf]
      %v1640 = vld [vmem:[%s1 + $0x4] sm:$0x3]
      %s1641 = scalar_lea.vmem %s1, 8
      %v1642 = vld [vmem:[%s1641] sm:$0xf]
      %v1643 = vld [vmem:[%s1641 + $0x4] sm:$0x3]
      %v1646 = vunpack.c.l.b16 %v1642
      %v1647 = vunpack.c.l.b16 %v1643
      %v1648 = vpack.c.b16 %v1647, %v1646
      %vm1649 = vcmask 97280
      %v1650 = vsel %vm1649, %v1608, 0
      %v1652 = vsel %vm1649, %v1610, 0
      %v1654 = vsel %vm1649, %v1612, 0
      %v1656 = vsel %vm1649, %v1614, 0
      %v1658 = vsel %vm1649, %v1616, 0
      %v1660 = vsel %vm1649, %v1618, 0
      %v1662 = vsel %vm1649, %v1620, 0
      %v1664 = vsel %vm1649, %v1622, 0
      %v1666 = vsel %vm1649, %v1624, 0
      %v1668 = vsel %vm1649, %v1626, 0
      %v1670 = vsel %vm1649, %v1628, 0
      %v1672 = vsel %vm1649, %v1630, 0
      %v1674 = vsel %vm1649, %v1632, 0
      %v1676 = vsel %vm1649, %v1634, 0
      %v1678 = vsel %vm1649, %v1636, 0
      %v1680 = vsel %vm1649, %v1638, 0
      %vm1682 = vcmask 1045504
      %v1684 = vsel %vm1682, %v1648, 0
      %1686 = vmatpush.bf16.msra.mxu0 0
      %1687 = vmatpush.bf16.msra.mxu0 0
      %1688 = vmatpush.bf16.msra.mxu0 0
      %1689 = vmatpush.bf16.msra.mxu0 0
      %1690 = vmatpush.bf16.msra.mxu0 0
      %1691 = vmatpush.bf16.msra.mxu0 0
      %1692 = vmatpush.bf16.msra.mxu0 0
      %1693 = vmatpush.bf16.msra.mxu0 %v1684
      %1694 = vmatmul.bf16.gmra.mxu0 %v1650
      %v1695 = vpop.f32.mrf.mxu0
      %v1696 = vadd.f32 0.0, %v1695
      %v1697 = vpop.f32.mrf.mxu0
      %v1698 = vadd.f32 0.0, %v1697
      %1699 = vmatmul.bf16.gmra.mxu0 %v1652
      %v1700 = vpop.f32.mrf.mxu0
      %v1701 = vadd.f32 0.0, %v1700
      %v1702 = vpop.f32.mrf.mxu0
      %v1703 = vadd.f32 0.0, %v1702
      %1704 = vmatmul.bf16.gmra.mxu0 %v1654
      %v1705 = vpop.f32.mrf.mxu0
      %v1706 = vadd.f32 0.0, %v1705
      %v1707 = vpop.f32.mrf.mxu0
      %v1708 = vadd.f32 0.0, %v1707
      %1709 = vmatmul.bf16.gmra.mxu0 %v1656
      %v1710 = vpop.f32.mrf.mxu0
      %v1711 = vadd.f32 0.0, %v1710
      %v1712 = vpop.f32.mrf.mxu0
      %v1713 = vadd.f32 0.0, %v1712
      %1714 = vmatmul.bf16.gmra.mxu0 %v1658
      %v1715 = vpop.f32.mrf.mxu0
      %v1716 = vadd.f32 0.0, %v1715
      %v1717 = vpop.f32.mrf.mxu0
      %v1718 = vadd.f32 0.0, %v1717
      %1719 = vmatmul.bf16.gmra.mxu0 %v1660
      %v1720 = vpop.f32.mrf.mxu0
      %v1721 = vadd.f32 0.0, %v1720
      %v1722 = vpop.f32.mrf.mxu0
      %v1723 = vadd.f32 0.0, %v1722
      %1724 = vmatmul.bf16.gmra.mxu0 %v1662
      %v1725 = vpop.f32.mrf.mxu0
      %v1726 = vadd.f32 0.0, %v1725
      %v1727 = vpop.f32.mrf.mxu0
      %v1728 = vadd.f32 0.0, %v1727
      %1729 = vmatmul.bf16.gmra.mxu0 %v1664
      %v1730 = vpop.f32.mrf.mxu0
      %v1731 = vadd.f32 0.0, %v1730
      %v1732 = vpop.f32.mrf.mxu0
      %v1733 = vadd.f32 0.0, %v1732
      %1734 = vmatmul.bf16.gmra.mxu0 %v1666
      %v1735 = vpop.f32.mrf.mxu0
      %v1736 = vadd.f32 0.0, %v1735
      %v1737 = vpop.f32.mrf.mxu0
      %v1738 = vadd.f32 0.0, %v1737
      %1739 = vmatmul.bf16.gmra.mxu0 %v1668
      %v1740 = vpop.f32.mrf.mxu0
      %v1741 = vadd.f32 0.0, %v1740
      %v1742 = vpop.f32.mrf.mxu0
      %v1743 = vadd.f32 0.0, %v1742
      %1744 = vmatmul.bf16.gmra.mxu0 %v1670
      %v1745 = vpop.f32.mrf.mxu0
      %v1746 = vadd.f32 0.0, %v1745
      %v1747 = vpop.f32.mrf.mxu0
      %v1748 = vadd.f32 0.0, %v1747
      %1749 = vmatmul.bf16.gmra.mxu0 %v1672
      %v1750 = vpop.f32.mrf.mxu0
      %v1751 = vadd.f32 0.0, %v1750
      %v1752 = vpop.f32.mrf.mxu0
      %v1753 = vadd.f32 0.0, %v1752
      %1754 = vmatmul.bf16.gmra.mxu0 %v1674
      %v1755 = vpop.f32.mrf.mxu0
      %v1756 = vadd.f32 0.0, %v1755
      %v1757 = vpop.f32.mrf.mxu0
      %v1758 = vadd.f32 0.0, %v1757
      %1759 = vmatmul.bf16.gmra.mxu0 %v1676
      %v1760 = vpop.f32.mrf.mxu0
      %v1761 = vadd.f32 0.0, %v1760
      %v1762 = vpop.f32.mrf.mxu0
      %v1763 = vadd.f32 0.0, %v1762
      %1764 = vmatmul.bf16.gmra.mxu0 %v1678
      %v1765 = vpop.f32.mrf.mxu0
      %v1766 = vadd.f32 0.0, %v1765
      %v1767 = vpop.f32.mrf.mxu0
      %v1768 = vadd.f32 0.0, %v1767
      %1769 = vmatmul.bf16.gmra.mxu0 %v1680
      %v1770 = vpop.f32.mrf.mxu0
      %v1771 = vadd.f32 0.0, %v1770
      %v1772 = vpop.f32.mrf.mxu0
      %v1773 = vadd.f32 0.0, %v1772
      %1774 = vdwg.mxu0
      %v1777 = vunpack.c.l.b16 %v1639
      %v1778 = vunpack.c.l.b16 %v1640
      %v1779 = vpack.c.b16 %v1778, %v1777
      %v1781 = vsel %vm1649, 0, 0
      %v1784 = vsel %vm1682, %v1779, 0
      %1786 = vmatpush.bf16.msra.mxu0 0
      %1787 = vmatpush.bf16.msra.mxu0 0
      %1788 = vmatpush.bf16.msra.mxu0 0
      %1789 = vmatpush.bf16.msra.mxu0 0
      %1790 = vmatpush.bf16.msra.mxu0 0
      %1791 = vmatpush.bf16.msra.mxu0 0
      %1792 = vmatpush.bf16.msra.mxu0 0
      %1793 = vmatpush.bf16.msra.mxu0 %v1784
      %1794 = vmatmul.bf16.gmra.mxu0 %v1781
      %v1795 = vpop.f32.mrf.mxu0
      %v1796 = vadd.f32 %v1696, %v1795
      %v1797 = vpop.f32.mrf.mxu0
      %v1798 = vadd.f32 %v1698, %v1797
      %1799 = vmatmul.bf16.gmra.mxu0 %v1650
      %v1800 = vpop.f32.mrf.mxu0
      %v1801 = vadd.f32 %v1701, %v1800
      %v1802 = vpop.f32.mrf.mxu0
      %v1803 = vadd.f32 %v1703, %v1802
      %1804 = vmatmul.bf16.gmra.mxu0 %v1652
      %v1805 = vpop.f32.mrf.mxu0
      %v1806 = vadd.f32 %v1706, %v1805
      %v1807 = vpop.f32.mrf.mxu0
      %v1808 = vadd.f32 %v1708, %v1807
      %1809 = vmatmul.bf16.gmra.mxu0 %v1654
      %v1810 = vpop.f32.mrf.mxu0
      %v1811 = vadd.f32 %v1711, %v1810
      %v1812 = vpop.f32.mrf.mxu0
      %v1813 = vadd.f32 %v1713, %v1812
      %1814 = vmatmul.bf16.gmra.mxu0 %v1656
      %v1815 = vpop.f32.mrf.mxu0
      %v1816 = vadd.f32 %v1716, %v1815
      %v1817 = vpop.f32.mrf.mxu0
      %v1818 = vadd.f32 %v1718, %v1817
      %1819 = vmatmul.bf16.gmra.mxu0 %v1658
      %v1820 = vpop.f32.mrf.mxu0
      %v1821 = vadd.f32 %v1721, %v1820
      %v1822 = vpop.f32.mrf.mxu0
      %v1823 = vadd.f32 %v1723, %v1822
      %1824 = vmatmul.bf16.gmra.mxu0 %v1660
      %v1825 = vpop.f32.mrf.mxu0
      %v1826 = vadd.f32 %v1726, %v1825
      %v1827 = vpop.f32.mrf.mxu0
      %v1828 = vadd.f32 %v1728, %v1827
      %1829 = vmatmul.bf16.gmra.mxu0 %v1662
      %v1830 = vpop.f32.mrf.mxu0
      %v1831 = vadd.f32 %v1731, %v1830
      %v1832 = vpop.f32.mrf.mxu0
      %v1833 = vadd.f32 %v1733, %v1832
      %1834 = vmatmul.bf16.gmra.mxu0 %v1664
      %v1835 = vpop.f32.mrf.mxu0
      %v1836 = vadd.f32 %v1736, %v1835
      %v1837 = vpop.f32.mrf.mxu0
      %v1838 = vadd.f32 %v1738, %v1837
      %1839 = vmatmul.bf16.gmra.mxu0 %v1666
      %v1840 = vpop.f32.mrf.mxu0
      %v1841 = vadd.f32 %v1741, %v1840
      %v1842 = vpop.f32.mrf.mxu0
      %v1843 = vadd.f32 %v1743, %v1842
      %1844 = vmatmul.bf16.gmra.mxu0 %v1668
      %v1845 = vpop.f32.mrf.mxu0
      %v1846 = vadd.f32 %v1746, %v1845
      %v1847 = vpop.f32.mrf.mxu0
      %v1848 = vadd.f32 %v1748, %v1847
      %1849 = vmatmul.bf16.gmra.mxu0 %v1670
      %v1850 = vpop.f32.mrf.mxu0
      %v1851 = vadd.f32 %v1751, %v1850
      %v1852 = vpop.f32.mrf.mxu0
      %v1853 = vadd.f32 %v1753, %v1852
      %1854 = vmatmul.bf16.gmra.mxu0 %v1672
      %v1855 = vpop.f32.mrf.mxu0
      %v1856 = vadd.f32 %v1756, %v1855
      %v1857 = vpop.f32.mrf.mxu0
      %v1858 = vadd.f32 %v1758, %v1857
      %1859 = vmatmul.bf16.gmra.mxu0 %v1674
      %v1860 = vpop.f32.mrf.mxu0
      %v1861 = vadd.f32 %v1761, %v1860
      %v1862 = vpop.f32.mrf.mxu0
      %v1863 = vadd.f32 %v1763, %v1862
      %1864 = vmatmul.bf16.gmra.mxu0 %v1676
      %v1865 = vpop.f32.mrf.mxu0
      %v1866 = vadd.f32 %v1766, %v1865
      %v1867 = vpop.f32.mrf.mxu0
      %v1868 = vadd.f32 %v1768, %v1867
      %1869 = vmatmul.bf16.gmra.mxu0 %v1678
      %v1870 = vpop.f32.mrf.mxu0
      %v1871 = vadd.f32 %v1771, %v1870
      %v1872 = vpop.f32.mrf.mxu0
      %v1873 = vadd.f32 %v1773, %v1872
      %1874 = vdwg.mxu0
      %s1875 = scalar_lea.vmem %s1, 16
      %v1876 = vld [vmem:[%s1875] sm:$0xf]
      %v1877 = vld [vmem:[%s1875 + $0x4] sm:$0x3]
      %v1880 = vunpack.c.l.b16 %v1876
      %v1881 = vunpack.c.l.b16 %v1877
      %v1882 = vpack.c.b16 %v1881, %v1880
      %v1884 = vsel %vm1682, %v1882, 0
      %1886 = vmatpush.bf16.msra.mxu0 0
      %1887 = vmatpush.bf16.msra.mxu0 0
      %1888 = vmatpush.bf16.msra.mxu0 0
      %1889 = vmatpush.bf16.msra.mxu0 0
      %1890 = vmatpush.bf16.msra.mxu0 0
      %1891 = vmatpush.bf16.msra.mxu0 0
      %1892 = vmatpush.bf16.msra.mxu0 0
      %1893 = vmatpush.bf16.msra.mxu0 %v1884
      %1894 = vmatmul.bf16.gmra.mxu0 %v1652
      %v1895 = vpop.f32.mrf.mxu0
      %v1896 = vadd.f32 0.0, %v1895
      %v1897 = vpop.f32.mrf.mxu0
      %v1898 = vadd.f32 0.0, %v1897
      %1899 = vmatmul.bf16.gmra.mxu0 %v1654
      %v1900 = vpop.f32.mrf.mxu0
      %v1901 = vadd.f32 0.0, %v1900
      %v1902 = vpop.f32.mrf.mxu0
      %v1903 = vadd.f32 0.0, %v1902
      %1904 = vmatmul.bf16.gmra.mxu0 %v1656
      %v1905 = vpop.f32.mrf.mxu0
      %v1906 = vadd.f32 0.0, %v1905
      %v1907 = vpop.f32.mrf.mxu0
      %v1908 = vadd.f32 0.0, %v1907
      %1909 = vmatmul.bf16.gmra.mxu0 %v1658
      %v1910 = vpop.f32.mrf.mxu0
      %v1911 = vadd.f32 0.0, %v1910
      %v1912 = vpop.f32.mrf.mxu0
      %v1913 = vadd.f32 0.0, %v1912
      %1914 = vmatmul.bf16.gmra.mxu0 %v1660
      %v1915 = vpop.f32.mrf.mxu0
      %v1916 = vadd.f32 0.0, %v1915
      %v1917 = vpop.f32.mrf.mxu0
      %v1918 = vadd.f32 0.0, %v1917
      %1919 = vmatmul.bf16.gmra.mxu0 %v1662
      %v1920 = vpop.f32.mrf.mxu0
      %v1921 = vadd.f32 0.0, %v1920
      %v1922 = vpop.f32.mrf.mxu0
      %v1923 = vadd.f32 0.0, %v1922
      %1924 = vmatmul.bf16.gmra.mxu0 %v1664
      %v1925 = vpop.f32.mrf.mxu0
      %v1926 = vadd.f32 0.0, %v1925
      %v1927 = vpop.f32.mrf.mxu0
      %v1928 = vadd.f32 0.0, %v1927
      %1929 = vmatmul.bf16.gmra.mxu0 %v1666
      %v1930 = vpop.f32.mrf.mxu0
      %v1931 = vadd.f32 0.0, %v1930
      %v1932 = vpop.f32.mrf.mxu0
      %v1933 = vadd.f32 0.0, %v1932
      %1934 = vmatmul.bf16.gmra.mxu0 %v1668
      %v1935 = vpop.f32.mrf.mxu0
      %v1936 = vadd.f32 0.0, %v1935
      %v1937 = vpop.f32.mrf.mxu0
      %v1938 = vadd.f32 0.0, %v1937
      %1939 = vmatmul.bf16.gmra.mxu0 %v1670
      %v1940 = vpop.f32.mrf.mxu0
      %v1941 = vadd.f32 0.0, %v1940
      %v1942 = vpop.f32.mrf.mxu0
      %v1943 = vadd.f32 0.0, %v1942
      %1944 = vmatmul.bf16.gmra.mxu0 %v1672
      %v1945 = vpop.f32.mrf.mxu0
      %v1946 = vadd.f32 0.0, %v1945
      %v1947 = vpop.f32.mrf.mxu0
      %v1948 = vadd.f32 0.0, %v1947
      %1949 = vmatmul.bf16.gmra.mxu0 %v1674
      %v1950 = vpop.f32.mrf.mxu0
      %v1951 = vadd.f32 0.0, %v1950
      %v1952 = vpop.f32.mrf.mxu0
      %v1953 = vadd.f32 0.0, %v1952
      %1954 = vmatmul.bf16.gmra.mxu0 %v1676
      %v1955 = vpop.f32.mrf.mxu0
      %v1956 = vadd.f32 0.0, %v1955
      %v1957 = vpop.f32.mrf.mxu0
      %v1958 = vadd.f32 0.0, %v1957
      %1959 = vmatmul.bf16.gmra.mxu0 %v1678
      %v1960 = vpop.f32.mrf.mxu0
      %v1961 = vadd.f32 0.0, %v1960
      %v1962 = vpop.f32.mrf.mxu0
      %v1963 = vadd.f32 0.0, %v1962
      %1964 = vmatmul.bf16.gmra.mxu0 %v1680
      %v1965 = vpop.f32.mrf.mxu0
      %v1966 = vadd.f32 0.0, %v1965
      %v1967 = vpop.f32.mrf.mxu0
      %v1968 = vadd.f32 0.0, %v1967
      %1969 = vmatmul.bf16.gmra.mxu0 %v1781
      %v1970 = vpop.f32.mrf.mxu0
      %v1971 = vadd.f32 0.0, %v1970
      %v1972 = vpop.f32.mrf.mxu0
      %v1973 = vadd.f32 0.0, %v1972
      %1974 = vdwg.mxu0
      %v1975 = vadd.f32 %v1796, %v1896
      %v1976 = vadd.f32 %v1798, %v1898
      %v1977 = vadd.f32 %v1801, %v1901
      %v1978 = vadd.f32 %v1803, %v1903
      %v1979 = vadd.f32 %v1806, %v1906
      %v1980 = vadd.f32 %v1808, %v1908
      %v1981 = vadd.f32 %v1811, %v1911
      %v1982 = vadd.f32 %v1813, %v1913
      %v1983 = vadd.f32 %v1816, %v1916
      %v1984 = vadd.f32 %v1818, %v1918
      %v1985 = vadd.f32 %v1821, %v1921
      %v1986 = vadd.f32 %v1823, %v1923
      %v1987 = vadd.f32 %v1826, %v1926
      %v1988 = vadd.f32 %v1828, %v1928
      %v1989 = vadd.f32 %v1831, %v1931
      %v1990 = vadd.f32 %v1833, %v1933
      %v1991 = vadd.f32 %v1836, %v1936
      %v1992 = vadd.f32 %v1838, %v1938
      %v1993 = vadd.f32 %v1841, %v1941
      %v1994 = vadd.f32 %v1843, %v1943
      %v1995 = vadd.f32 %v1846, %v1946
      %v1996 = vadd.f32 %v1848, %v1948
      %v1997 = vadd.f32 %v1851, %v1951
      %v1998 = vadd.f32 %v1853, %v1953
      %v1999 = vadd.f32 %v1856, %v1956
      %v2000 = vadd.f32 %v1858, %v1958
      %v2001 = vadd.f32 %v1861, %v1961
      %v2002 = vadd.f32 %v1863, %v1963
      %v2003 = vadd.f32 %v1866, %v1966
      %v2004 = vadd.f32 %v1868, %v1968
      %v2005 = vadd.f32 %v1871, %v1971
      %v2006 = vadd.f32 %v1873, %v1973
      %v2007 = vld [vmem:[%s2] sm:$0x1]
      %v2009 = vperm.slane %v2007, 0
      %v2011 = vadd.f32 %v1975, %v2009
      %v2012 = vadd.f32 %v1976, %v2009
      %v2013 = vadd.f32 %v1977, %v2009
      %v2014 = vadd.f32 %v1978, %v2009
      %v2015 = vadd.f32 %v1979, %v2009
      %v2016 = vadd.f32 %v1980, %v2009
      %v2017 = vadd.f32 %v1981, %v2009
      %v2018 = vadd.f32 %v1982, %v2009
      %v2019 = vadd.f32 %v1983, %v2009
      %v2020 = vadd.f32 %v1984, %v2009
      %v2021 = vadd.f32 %v1985, %v2009
      %v2022 = vadd.f32 %v1986, %v2009
      %v2023 = vadd.f32 %v1987, %v2009
      %v2024 = vadd.f32 %v1988, %v2009
      %v2025 = vadd.f32 %v1989, %v2009
      %v2026 = vadd.f32 %v1990, %v2009
      %v2027 = vadd.f32 %v1991, %v2009
      %v2028 = vadd.f32 %v1992, %v2009
      %v2029 = vadd.f32 %v1993, %v2009
      %v2030 = vadd.f32 %v1994, %v2009
      %v2031 = vadd.f32 %v1995, %v2009
      %v2032 = vadd.f32 %v1996, %v2009
      %v2033 = vadd.f32 %v1997, %v2009
      %v2034 = vadd.f32 %v1998, %v2009
      %v2035 = vadd.f32 %v1999, %v2009
      %v2036 = vadd.f32 %v2000, %v2009
      %v2037 = vadd.f32 %v2001, %v2009
      %v2038 = vadd.f32 %v2002, %v2009
      %v2039 = vadd.f32 %v2003, %v2009
      %v2040 = vadd.f32 %v2004, %v2009
      %v2041 = vadd.f32 %v2005, %v2009
      %v2042 = vadd.f32 %v2006, %v2009
      %v2043 = vmax.f32 %v2011, 0.0
      %v2044 = vmax.f32 %v2012, 0.0
      %v2045 = vmax.f32 %v2013, 0.0
      %v2046 = vmax.f32 %v2014, 0.0
      %v2047 = vmax.f32 %v2015, 0.0
      %v2048 = vmax.f32 %v2016, 0.0
      %v2049 = vmax.f32 %v2017, 0.0
      %v2050 = vmax.f32 %v2018, 0.0
      %v2051 = vmax.f32 %v2019, 0.0
      %v2052 = vmax.f32 %v2020, 0.0
      %v2053 = vmax.f32 %v2021, 0.0
      %v2054 = vmax.f32 %v2022, 0.0
      %v2055 = vmax.f32 %v2023, 0.0
      %v2056 = vmax.f32 %v2024, 0.0
      %v2057 = vmax.f32 %v2025, 0.0
      %v2058 = vmax.f32 %v2026, 0.0
      %v2059 = vmax.f32 %v2027, 0.0
      %v2060 = vmax.f32 %v2028, 0.0
      %v2061 = vmax.f32 %v2029, 0.0
      %v2062 = vmax.f32 %v2030, 0.0
      %v2063 = vmax.f32 %v2031, 0.0
      %v2064 = vmax.f32 %v2032, 0.0
      %v2065 = vmax.f32 %v2033, 0.0
      %v2066 = vmax.f32 %v2034, 0.0
      %v2067 = vmax.f32 %v2035, 0.0
      %v2068 = vmax.f32 %v2036, 0.0
      %v2069 = vmax.f32 %v2037, 0.0
      %v2070 = vmax.f32 %v2038, 0.0
      %v2071 = vmax.f32 %v2039, 0.0
      %v2072 = vmax.f32 %v2040, 0.0
      %v2073 = vmax.f32 %v2041, 0.0
      %v2074 = vmax.f32 %v2042, 0.0
      %v2107 = vrot.slane %v2043, 7
      %v2108 = vrot.slane %v2044, 7
      %v2109 = vsel %vm899, %v2107, %v2108
      %v2110 = vrot.slane %v2045, 7
      %v2111 = vsel %vm899, %v2108, %v2110
      %v2112 = vrot.slane %v2046, 7
      %v2113 = vsel %vm899, %v2110, %v2112
      %v2114 = vrot.slane %v2047, 7
      %v2115 = vsel %vm899, %v2112, %v2114
      %v2116 = vrot.slane %v2048, 7
      %v2117 = vsel %vm899, %v2114, %v2116
      %v2118 = vrot.slane %v2049, 7
      %v2119 = vsel %vm899, %v2116, %v2118
      %v2120 = vrot.slane %v2050, 7
      %v2121 = vsel %vm899, %v2118, %v2120
      %v2122 = vrot.slane %v2051, 7
      %v2123 = vsel %vm899, %v2120, %v2122
      %v2124 = vrot.slane %v2052, 7
      %v2125 = vsel %vm899, %v2122, %v2124
      %v2126 = vrot.slane %v2053, 7
      %v2127 = vsel %vm899, %v2124, %v2126
      %v2128 = vrot.slane %v2054, 7
      %v2129 = vsel %vm899, %v2126, %v2128
      %v2130 = vrot.slane %v2055, 7
      %v2131 = vsel %vm899, %v2128, %v2130
      %v2132 = vrot.slane %v2056, 7
      %v2133 = vsel %vm899, %v2130, %v2132
      %v2134 = vrot.slane %v2057, 7
      %v2135 = vsel %vm899, %v2132, %v2134
      %v2136 = vrot.slane %v2058, 7
      %v2137 = vsel %vm899, %v2134, %v2136
      %v2138 = vrot.slane %v2059, 7
      %v2139 = vsel %vm899, %v2136, %v2138
      %v2140 = vrot.slane %v2060, 7
      %v2141 = vsel %vm899, %v2138, %v2140
      %v2142 = vrot.slane %v2061, 7
      %v2143 = vsel %vm899, %v2140, %v2142
      %v2144 = vrot.slane %v2062, 7
      %v2145 = vsel %vm899, %v2142, %v2144
      %v2146 = vrot.slane %v2063, 7
      %v2147 = vsel %vm899, %v2144, %v2146
      %v2148 = vrot.slane %v2064, 7
      %v2149 = vsel %vm899, %v2146, %v2148
      %v2150 = vrot.slane %v2065, 7
      %v2151 = vsel %vm899, %v2148, %v2150
      %v2152 = vrot.slane %v2066, 7
      %v2153 = vsel %vm899, %v2150, %v2152
      %v2154 = vrot.slane %v2067, 7
      %v2155 = vsel %vm899, %v2152, %v2154
      %v2156 = vrot.slane %v2068, 7
      %v2157 = vsel %vm899, %v2154, %v2156
      %v2158 = vrot.slane %v2069, 7
      %v2159 = vsel %vm899, %v2156, %v2158
      %v2160 = vrot.slane %v2070, 7
      %v2161 = vsel %vm899, %v2158, %v2160
      %v2162 = vrot.slane %v2071, 7
      %v2163 = vsel %vm899, %v2160, %v2162
      %v2164 = vrot.slane %v2072, 7
      %v2165 = vsel %vm899, %v2162, %v2164
      %v2166 = vrot.slane %v2073, 7
      %v2167 = vsel %vm899, %v2164, %v2166
      %v2168 = vrot.slane %v2074, 7
      %v2169 = vsel %vm899, %v2166, %v2168
      %v2202 = vsel %vm899, 0.0, %v2107
      %v2203 = vsel %vm739, %v2202, 0.0
      %v2204 = vsel %vm740, %v2109, 0.0
      %v2205 = vsel %vm741, %v2111, 0.0
      %v2206 = vsel %vm742, %v2113, 0.0
      %v2207 = vsel %vm743, %v2115, 0.0
      %v2208 = vsel %vm744, %v2117, 0.0
      %v2209 = vsel %vm745, %v2119, 0.0
      %v2210 = vsel %vm746, %v2121, 0.0
      %v2211 = vsel %vm747, %v2123, 0.0
      %v2212 = vsel %vm748, %v2125, 0.0
      %v2213 = vsel %vm749, %v2127, 0.0
      %v2214 = vsel %vm750, %v2129, 0.0
      %v2215 = vsel %vm751, %v2131, 0.0
      %v2216 = vsel %vm752, %v2133, 0.0
      %v2217 = vsel %vm753, %v2135, 0.0
      %v2218 = vsel %vm754, %v2137, 0.0
      %v2219 = vsel %vm755, %v2139, 0.0
      %v2220 = vsel %vm756, %v2141, 0.0
      %v2221 = vsel %vm757, %v2143, 0.0
      %v2222 = vsel %vm758, %v2145, 0.0
      %v2223 = vsel %vm759, %v2147, 0.0
      %v2224 = vsel %vm760, %v2149, 0.0
      %v2225 = vsel %vm761, %v2151, 0.0
      %v2226 = vsel %vm762, %v2153, 0.0
      %v2227 = vsel %vm763, %v2155, 0.0
      %v2228 = vsel %vm764, %v2157, 0.0
      %v2229 = vsel %vm765, %v2159, 0.0
      %v2230 = vsel %vm766, %v2161, 0.0
      %v2231 = vsel %vm767, %v2163, 0.0
      %v2232 = vsel %vm768, %v2165, 0.0
      %v2233 = vsel %vm769, %v2167, 0.0
      %v2234 = vsel %vm770, %v2169, 0.0
      %v2235 = vpack.c.bf16 %v2203, %v2203
      %v2236 = vpack.c.bf16 %v2204, %v2204
      %v2237 = vpack.c.bf16 %v2205, %v2205
      %v2238 = vpack.c.bf16 %v2206, %v2206
      %v2239 = vpack.c.bf16 %v2207, %v2207
      %v2240 = vpack.c.bf16 %v2208, %v2208
      %v2241 = vpack.c.bf16 %v2209, %v2209
      %v2242 = vpack.c.bf16 %v2210, %v2210
      %v2243 = vpack.c.bf16 %v2211, %v2211
      %v2244 = vpack.c.bf16 %v2212, %v2212
      %v2245 = vpack.c.bf16 %v2213, %v2213
      %v2246 = vpack.c.bf16 %v2214, %v2214
      %v2247 = vpack.c.bf16 %v2215, %v2215
      %v2248 = vpack.c.bf16 %v2216, %v2216
      %v2249 = vpack.c.bf16 %v2217, %v2217
      %v2250 = vpack.c.bf16 %v2218, %v2218
      %v2251 = vpack.c.bf16 %v2219, %v2219
      %v2252 = vpack.c.bf16 %v2220, %v2220
      %v2253 = vpack.c.bf16 %v2221, %v2221
      %v2254 = vpack.c.bf16 %v2222, %v2222
      %v2255 = vpack.c.bf16 %v2223, %v2223
      %v2256 = vpack.c.bf16 %v2224, %v2224
      %v2257 = vpack.c.bf16 %v2225, %v2225
      %v2258 = vpack.c.bf16 %v2226, %v2226
      %v2259 = vpack.c.bf16 %v2227, %v2227
      %v2260 = vpack.c.bf16 %v2228, %v2228
      %v2261 = vpack.c.bf16 %v2229, %v2229
      %v2262 = vpack.c.bf16 %v2230, %v2230
      %v2263 = vpack.c.bf16 %v2231, %v2231
      %v2264 = vpack.c.bf16 %v2232, %v2232
      %v2265 = vpack.c.bf16 %v2233, %v2233
      %v2266 = vpack.c.bf16 %v2234, %v2234
      %v2267 = vpack.c.bf16 %v2043, %v2043
      %v2268 = vpack.c.bf16 %v2044, %v2044
      %v2269 = vpack.c.bf16 %v2045, %v2045
      %v2270 = vpack.c.bf16 %v2046, %v2046
      %v2271 = vpack.c.bf16 %v2047, %v2047
      %v2272 = vpack.c.bf16 %v2048, %v2048
      %v2273 = vpack.c.bf16 %v2049, %v2049
      %v2274 = vpack.c.bf16 %v2050, %v2050
      %v2275 = vpack.c.bf16 %v2051, %v2051
      %v2276 = vpack.c.bf16 %v2052, %v2052
      %v2277 = vpack.c.bf16 %v2053, %v2053
      %v2278 = vpack.c.bf16 %v2054, %v2054
      %v2279 = vpack.c.bf16 %v2055, %v2055
      %v2280 = vpack.c.bf16 %v2056, %v2056
      %v2281 = vpack.c.bf16 %v2057, %v2057
      %v2282 = vpack.c.bf16 %v2058, %v2058
      %v2283 = vpack.c.bf16 %v2059, %v2059
      %v2284 = vpack.c.bf16 %v2060, %v2060
      %v2285 = vpack.c.bf16 %v2061, %v2061
      %v2286 = vpack.c.bf16 %v2062, %v2062
      %v2287 = vpack.c.bf16 %v2063, %v2063
      %v2288 = vpack.c.bf16 %v2064, %v2064
      %v2289 = vpack.c.bf16 %v2065, %v2065
      %v2290 = vpack.c.bf16 %v2066, %v2066
      %v2291 = vpack.c.bf16 %v2067, %v2067
      %v2292 = vpack.c.bf16 %v2068, %v2068
      %v2293 = vpack.c.bf16 %v2069, %v2069
      %v2294 = vpack.c.bf16 %v2070, %v2070
      %v2295 = vpack.c.bf16 %v2071, %v2071
      %v2296 = vpack.c.bf16 %v2072, %v2072
      %v2297 = vpack.c.bf16 %v2073, %v2073
      %v2298 = vpack.c.bf16 %v2074, %v2074
      %v2299 = vrot.slane %v2043, 1
      %v2300 = vrot.slane %v2044, 1
      %v2301 = vsel %vm1092, %v2299, %v2300
      %v2302 = vrot.slane %v2045, 1
      %v2303 = vsel %vm1092, %v2300, %v2302
      %v2304 = vrot.slane %v2046, 1
      %v2305 = vsel %vm1092, %v2302, %v2304
      %v2306 = vrot.slane %v2047, 1
      %v2307 = vsel %vm1092, %v2304, %v2306
      %v2308 = vrot.slane %v2048, 1
      %v2309 = vsel %vm1092, %v2306, %v2308
      %v2310 = vrot.slane %v2049, 1
      %v2311 = vsel %vm1092, %v2308, %v2310
      %v2312 = vrot.slane %v2050, 1
      %v2313 = vsel %vm1092, %v2310, %v2312
      %v2314 = vrot.slane %v2051, 1
      %v2315 = vsel %vm1092, %v2312, %v2314
      %v2316 = vrot.slane %v2052, 1
      %v2317 = vsel %vm1092, %v2314, %v2316
      %v2318 = vrot.slane %v2053, 1
      %v2319 = vsel %vm1092, %v2316, %v2318
      %v2320 = vrot.slane %v2054, 1
      %v2321 = vsel %vm1092, %v2318, %v2320
      %v2322 = vrot.slane %v2055, 1
      %v2323 = vsel %vm1092, %v2320, %v2322
      %v2324 = vrot.slane %v2056, 1
      %v2325 = vsel %vm1092, %v2322, %v2324
      %v2326 = vrot.slane %v2057, 1
      %v2327 = vsel %vm1092, %v2324, %v2326
      %v2328 = vrot.slane %v2058, 1
      %v2329 = vsel %vm1092, %v2326, %v2328
      %v2330 = vrot.slane %v2059, 1
      %v2331 = vsel %vm1092, %v2328, %v2330
      %v2332 = vrot.slane %v2060, 1
      %v2333 = vsel %vm1092, %v2330, %v2332
      %v2334 = vrot.slane %v2061, 1
      %v2335 = vsel %vm1092, %v2332, %v2334
      %v2336 = vrot.slane %v2062, 1
      %v2337 = vsel %vm1092, %v2334, %v2336
      %v2338 = vrot.slane %v2063, 1
      %v2339 = vsel %vm1092, %v2336, %v2338
      %v2340 = vrot.slane %v2064, 1
      %v2341 = vsel %vm1092, %v2338, %v2340
      %v2342 = vrot.slane %v2065, 1
      %v2343 = vsel %vm1092, %v2340, %v2342
      %v2344 = vrot.slane %v2066, 1
      %v2345 = vsel %vm1092, %v2342, %v2344
      %v2346 = vrot.slane %v2067, 1
      %v2347 = vsel %vm1092, %v2344, %v2346
      %v2348 = vrot.slane %v2068, 1
      %v2349 = vsel %vm1092, %v2346, %v2348
      %v2350 = vrot.slane %v2069, 1
      %v2351 = vsel %vm1092, %v2348, %v2350
      %v2352 = vrot.slane %v2070, 1
      %v2353 = vsel %vm1092, %v2350, %v2352
      %v2354 = vrot.slane %v2071, 1
      %v2355 = vsel %vm1092, %v2352, %v2354
      %v2356 = vrot.slane %v2072, 1
      %v2357 = vsel %vm1092, %v2354, %v2356
      %v2358 = vrot.slane %v2073, 1
      %v2359 = vsel %vm1092, %v2356, %v2358
      %v2360 = vrot.slane %v2074, 1
      %v2361 = vsel %vm1092, %v2358, %v2360
      %v2394 = vsel %vm1092, %v2360, 0.0
      %v2395 = vsel %vm835, %v2301, 0.0
      %v2396 = vsel %vm836, %v2303, 0.0
      %v2397 = vsel %vm837, %v2305, 0.0
      %v2398 = vsel %vm838, %v2307, 0.0
      %v2399 = vsel %vm839, %v2309, 0.0
      %v2400 = vsel %vm840, %v2311, 0.0
      %v2401 = vsel %vm841, %v2313, 0.0
      %v2402 = vsel %vm842, %v2315, 0.0
      %v2403 = vsel %vm843, %v2317, 0.0
      %v2404 = vsel %vm844, %v2319, 0.0
      %v2405 = vsel %vm845, %v2321, 0.0
      %v2406 = vsel %vm846, %v2323, 0.0
      %v2407 = vsel %vm847, %v2325, 0.0
      %v2408 = vsel %vm848, %v2327, 0.0
      %v2409 = vsel %vm849, %v2329, 0.0
      %v2410 = vsel %vm850, %v2331, 0.0
      %v2411 = vsel %vm851, %v2333, 0.0
      %v2412 = vsel %vm852, %v2335, 0.0
      %v2413 = vsel %vm853, %v2337, 0.0
      %v2414 = vsel %vm854, %v2339, 0.0
      %v2415 = vsel %vm855, %v2341, 0.0
      %v2416 = vsel %vm856, %v2343, 0.0
      %v2417 = vsel %vm857, %v2345, 0.0
      %v2418 = vsel %vm858, %v2347, 0.0
      %v2419 = vsel %vm859, %v2349, 0.0
      %v2420 = vsel %vm860, %v2351, 0.0
      %v2421 = vsel %vm861, %v2353, 0.0
      %v2422 = vsel %vm862, %v2355, 0.0
      %v2423 = vsel %vm863, %v2357, 0.0
      %v2424 = vsel %vm864, %v2359, 0.0
      %v2425 = vsel %vm865, %v2361, 0.0
      %v2426 = vsel %vm866, %v2394, 0.0
      %v2427 = vpack.c.bf16 %v2395, %v2395
      %v2428 = vpack.c.bf16 %v2396, %v2396
      %v2429 = vpack.c.bf16 %v2397, %v2397
      %v2430 = vpack.c.bf16 %v2398, %v2398
      %v2431 = vpack.c.bf16 %v2399, %v2399
      %v2432 = vpack.c.bf16 %v2400, %v2400
      %v2433 = vpack.c.bf16 %v2401, %v2401
      %v2434 = vpack.c.bf16 %v2402, %v2402
      %v2435 = vpack.c.bf16 %v2403, %v2403
      %v2436 = vpack.c.bf16 %v2404, %v2404
      %v2437 = vpack.c.bf16 %v2405, %v2405
      %v2438 = vpack.c.bf16 %v2406, %v2406
      %v2439 = vpack.c.bf16 %v2407, %v2407
      %v2440 = vpack.c.bf16 %v2408, %v2408
      %v2441 = vpack.c.bf16 %v2409, %v2409
      %v2442 = vpack.c.bf16 %v2410, %v2410
      %v2443 = vpack.c.bf16 %v2411, %v2411
      %v2444 = vpack.c.bf16 %v2412, %v2412
      %v2445 = vpack.c.bf16 %v2413, %v2413
      %v2446 = vpack.c.bf16 %v2414, %v2414
      %v2447 = vpack.c.bf16 %v2415, %v2415
      %v2448 = vpack.c.bf16 %v2416, %v2416
      %v2449 = vpack.c.bf16 %v2417, %v2417
      %v2450 = vpack.c.bf16 %v2418, %v2418
      %v2451 = vpack.c.bf16 %v2419, %v2419
      %v2452 = vpack.c.bf16 %v2420, %v2420
      %v2453 = vpack.c.bf16 %v2421, %v2421
      %v2454 = vpack.c.bf16 %v2422, %v2422
      %v2455 = vpack.c.bf16 %v2423, %v2423
      %v2456 = vpack.c.bf16 %v2424, %v2424
      %v2457 = vpack.c.bf16 %v2425, %v2425
      %v2458 = vpack.c.bf16 %v2426, %v2426
      %v2491 = vunpack.c.l.b16 %v2235
      %v2492 = vunpack.c.l.b16 %v2236
      %v2493 = vunpack.c.l.b16 %v2237
      %v2494 = vunpack.c.l.b16 %v2238
      %v2495 = vunpack.c.l.b16 %v2239
      %v2496 = vunpack.c.l.b16 %v2240
      %v2497 = vunpack.c.l.b16 %v2241
      %v2498 = vunpack.c.l.b16 %v2242
      %v2499 = vunpack.c.l.b16 %v2243
      %v2500 = vunpack.c.l.b16 %v2244
      %v2501 = vunpack.c.l.b16 %v2245
      %v2502 = vunpack.c.l.b16 %v2246
      %v2503 = vunpack.c.l.b16 %v2247
      %v2504 = vunpack.c.l.b16 %v2248
      %v2505 = vunpack.c.l.b16 %v2249
      %v2506 = vunpack.c.l.b16 %v2250
      %v2507 = vunpack.c.l.b16 %v2251
      %v2508 = vunpack.c.l.b16 %v2252
      %v2509 = vunpack.c.l.b16 %v2253
      %v2510 = vunpack.c.l.b16 %v2254
      %v2511 = vunpack.c.l.b16 %v2255
      %v2512 = vunpack.c.l.b16 %v2256
      %v2513 = vunpack.c.l.b16 %v2257
      %v2514 = vunpack.c.l.b16 %v2258
      %v2515 = vunpack.c.l.b16 %v2259
      %v2516 = vunpack.c.l.b16 %v2260
      %v2517 = vunpack.c.l.b16 %v2261
      %v2518 = vunpack.c.l.b16 %v2262
      %v2519 = vunpack.c.l.b16 %v2263
      %v2520 = vunpack.c.l.b16 %v2264
      %v2521 = vunpack.c.l.b16 %v2265
      %v2522 = vunpack.c.l.b16 %v2266
      %v2523 = vpack.c.b16 %v2492, %v2491
      %v2524 = vpack.c.b16 %v2494, %v2493
      %v2525 = vpack.c.b16 %v2496, %v2495
      %v2526 = vpack.c.b16 %v2498, %v2497
      %v2527 = vpack.c.b16 %v2500, %v2499
      %v2528 = vpack.c.b16 %v2502, %v2501
      %v2529 = vpack.c.b16 %v2504, %v2503
      %v2530 = vpack.c.b16 %v2506, %v2505
      %v2531 = vpack.c.b16 %v2508, %v2507
      %v2532 = vpack.c.b16 %v2510, %v2509
      %v2533 = vpack.c.b16 %v2512, %v2511
      %v2534 = vpack.c.b16 %v2514, %v2513
      %v2535 = vpack.c.b16 %v2516, %v2515
      %v2536 = vpack.c.b16 %v2518, %v2517
      %v2537 = vpack.c.b16 %v2520, %v2519
      %v2538 = vpack.c.b16 %v2522, %v2521
      %v2571 = vunpack.c.l.b16 %v2267
      %v2572 = vunpack.c.l.b16 %v2268
      %v2573 = vunpack.c.l.b16 %v2269
      %v2574 = vunpack.c.l.b16 %v2270
      %v2575 = vunpack.c.l.b16 %v2271
      %v2576 = vunpack.c.l.b16 %v2272
      %v2577 = vunpack.c.l.b16 %v2273
      %v2578 = vunpack.c.l.b16 %v2274
      %v2579 = vunpack.c.l.b16 %v2275
      %v2580 = vunpack.c.l.b16 %v2276
      %v2581 = vunpack.c.l.b16 %v2277
      %v2582 = vunpack.c.l.b16 %v2278
      %v2583 = vunpack.c.l.b16 %v2279
      %v2584 = vunpack.c.l.b16 %v2280
      %v2585 = vunpack.c.l.b16 %v2281
      %v2586 = vunpack.c.l.b16 %v2282
      %v2587 = vunpack.c.l.b16 %v2283
      %v2588 = vunpack.c.l.b16 %v2284
      %v2589 = vunpack.c.l.b16 %v2285
      %v2590 = vunpack.c.l.b16 %v2286
      %v2591 = vunpack.c.l.b16 %v2287
      %v2592 = vunpack.c.l.b16 %v2288
      %v2593 = vunpack.c.l.b16 %v2289
      %v2594 = vunpack.c.l.b16 %v2290
      %v2595 = vunpack.c.l.b16 %v2291
      %v2596 = vunpack.c.l.b16 %v2292
      %v2597 = vunpack.c.l.b16 %v2293
      %v2598 = vunpack.c.l.b16 %v2294
      %v2599 = vunpack.c.l.b16 %v2295
      %v2600 = vunpack.c.l.b16 %v2296
      %v2601 = vunpack.c.l.b16 %v2297
      %v2602 = vunpack.c.l.b16 %v2298
      %v2603 = vpack.c.b16 %v2572, %v2571
      %v2604 = vpack.c.b16 %v2574, %v2573
      %v2605 = vpack.c.b16 %v2576, %v2575
      %v2606 = vpack.c.b16 %v2578, %v2577
      %v2607 = vpack.c.b16 %v2580, %v2579
      %v2608 = vpack.c.b16 %v2582, %v2581
      %v2609 = vpack.c.b16 %v2584, %v2583
      %v2610 = vpack.c.b16 %v2586, %v2585
      %v2611 = vpack.c.b16 %v2588, %v2587
      %v2612 = vpack.c.b16 %v2590, %v2589
      %v2613 = vpack.c.b16 %v2592, %v2591
      %v2614 = vpack.c.b16 %v2594, %v2593
      %v2615 = vpack.c.b16 %v2596, %v2595
      %v2616 = vpack.c.b16 %v2598, %v2597
      %v2617 = vpack.c.b16 %v2600, %v2599
      %v2618 = vpack.c.b16 %v2602, %v2601
      %2619 = vrot.lane.b32.xlu0 %v2603, 4
      %v2620 = vpop.permute.xlu0 %2619
      %2621 = vrot.lane.b32.xlu0 %v2604, 4
      %v2622 = vpop.permute.xlu0 %2621
      %2623 = vrot.lane.b32.xlu0 %v2605, 4
      %v2624 = vpop.permute.xlu0 %2623
      %2625 = vrot.lane.b32.xlu0 %v2606, 4
      %v2626 = vpop.permute.xlu0 %2625
      %2627 = vrot.lane.b32.xlu0 %v2607, 4
      %v2628 = vpop.permute.xlu0 %2627
      %2629 = vrot.lane.b32.xlu0 %v2608, 4
      %v2630 = vpop.permute.xlu0 %2629
      %2631 = vrot.lane.b32.xlu0 %v2609, 4
      %v2632 = vpop.permute.xlu0 %2631
      %2633 = vrot.lane.b32.xlu0 %v2610, 4
      %v2634 = vpop.permute.xlu0 %2633
      %2635 = vrot.lane.b32.xlu0 %v2611, 4
      %v2636 = vpop.permute.xlu0 %2635
      %2637 = vrot.lane.b32.xlu0 %v2612, 4
      %v2638 = vpop.permute.xlu0 %2637
      %2639 = vrot.lane.b32.xlu0 %v2613, 4
      %v2640 = vpop.permute.xlu0 %2639
      %2641 = vrot.lane.b32.xlu0 %v2614, 4
      %v2642 = vpop.permute.xlu0 %2641
      %2643 = vrot.lane.b32.xlu0 %v2615, 4
      %v2644 = vpop.permute.xlu0 %2643
      %2645 = vrot.lane.b32.xlu0 %v2616, 4
      %v2646 = vpop.permute.xlu0 %2645
      %2647 = vrot.lane.b32.xlu0 %v2617, 4
      %v2648 = vpop.permute.xlu0 %2647
      %2649 = vrot.lane.b32.xlu0 %v2618, 4
      %v2650 = vpop.permute.xlu0 %2649
      %v2683 = vunpack.c.l.b16 %v2427
      %v2684 = vunpack.c.l.b16 %v2428
      %v2685 = vunpack.c.l.b16 %v2429
      %v2686 = vunpack.c.l.b16 %v2430
      %v2687 = vunpack.c.l.b16 %v2431
      %v2688 = vunpack.c.l.b16 %v2432
      %v2689 = vunpack.c.l.b16 %v2433
      %v2690 = vunpack.c.l.b16 %v2434
      %v2691 = vunpack.c.l.b16 %v2435
      %v2692 = vunpack.c.l.b16 %v2436
      %v2693 = vunpack.c.l.b16 %v2437
      %v2694 = vunpack.c.l.b16 %v2438
      %v2695 = vunpack.c.l.b16 %v2439
      %v2696 = vunpack.c.l.b16 %v2440
      %v2697 = vunpack.c.l.b16 %v2441
      %v2698 = vunpack.c.l.b16 %v2442
      %v2699 = vunpack.c.l.b16 %v2443
      %v2700 = vunpack.c.l.b16 %v2444
      %v2701 = vunpack.c.l.b16 %v2445
      %v2702 = vunpack.c.l.b16 %v2446
      %v2703 = vunpack.c.l.b16 %v2447
      %v2704 = vunpack.c.l.b16 %v2448
      %v2705 = vunpack.c.l.b16 %v2449
      %v2706 = vunpack.c.l.b16 %v2450
      %v2707 = vunpack.c.l.b16 %v2451
      %v2708 = vunpack.c.l.b16 %v2452
      %v2709 = vunpack.c.l.b16 %v2453
      %v2710 = vunpack.c.l.b16 %v2454
      %v2711 = vunpack.c.l.b16 %v2455
      %v2712 = vunpack.c.l.b16 %v2456
      %v2713 = vunpack.c.l.b16 %v2457
      %v2714 = vunpack.c.l.b16 %v2458
      %v2715 = vpack.c.b16 %v2684, %v2683
      %v2716 = vpack.c.b16 %v2686, %v2685
      %v2717 = vpack.c.b16 %v2688, %v2687
      %v2718 = vpack.c.b16 %v2690, %v2689
      %v2719 = vpack.c.b16 %v2692, %v2691
      %v2720 = vpack.c.b16 %v2694, %v2693
      %v2721 = vpack.c.b16 %v2696, %v2695
      %v2722 = vpack.c.b16 %v2698, %v2697
      %v2723 = vpack.c.b16 %v2700, %v2699
      %v2724 = vpack.c.b16 %v2702, %v2701
      %v2725 = vpack.c.b16 %v2704, %v2703
      %v2726 = vpack.c.b16 %v2706, %v2705
      %v2727 = vpack.c.b16 %v2708, %v2707
      %v2728 = vpack.c.b16 %v2710, %v2709
      %v2729 = vpack.c.b16 %v2712, %v2711
      %v2730 = vpack.c.b16 %v2714, %v2713
      %2731 = vrot.lane.b32.xlu0 %v2715, 8
      %v2732 = vpop.permute.xlu0 %2731
      %2733 = vrot.lane.b32.xlu0 %v2716, 8
      %v2734 = vpop.permute.xlu0 %2733
      %2735 = vrot.lane.b32.xlu0 %v2717, 8
      %v2736 = vpop.permute.xlu0 %2735
      %2737 = vrot.lane.b32.xlu0 %v2718, 8
      %v2738 = vpop.permute.xlu0 %2737
      %2739 = vrot.lane.b32.xlu0 %v2719, 8
      %v2740 = vpop.permute.xlu0 %2739
      %2741 = vrot.lane.b32.xlu0 %v2720, 8
      %v2742 = vpop.permute.xlu0 %2741
      %2743 = vrot.lane.b32.xlu0 %v2721, 8
      %v2744 = vpop.permute.xlu0 %2743
      %2745 = vrot.lane.b32.xlu0 %v2722, 8
      %v2746 = vpop.permute.xlu0 %2745
      %2747 = vrot.lane.b32.xlu0 %v2723, 8
      %v2748 = vpop.permute.xlu0 %2747
      %2749 = vrot.lane.b32.xlu0 %v2724, 8
      %v2750 = vpop.permute.xlu0 %2749
      %2751 = vrot.lane.b32.xlu0 %v2725, 8
      %v2752 = vpop.permute.xlu0 %2751
      %2753 = vrot.lane.b32.xlu0 %v2726, 8
      %v2754 = vpop.permute.xlu0 %2753
      %2755 = vrot.lane.b32.xlu0 %v2727, 8
      %v2756 = vpop.permute.xlu0 %2755
      %2757 = vrot.lane.b32.xlu0 %v2728, 8
      %v2758 = vpop.permute.xlu0 %2757
      %2759 = vrot.lane.b32.xlu0 %v2729, 8
      %v2760 = vpop.permute.xlu0 %2759
      %2761 = vrot.lane.b32.xlu0 %v2730, 8
      %v2762 = vpop.permute.xlu0 %2761
      %v2765 = vsel %vm1557, %v2523, %v2620
      %v2768 = vsel %vm1557, %v2524, %v2622
      %v2771 = vsel %vm1557, %v2525, %v2624
      %v2774 = vsel %vm1557, %v2526, %v2626
      %v2777 = vsel %vm1557, %v2527, %v2628
      %v2780 = vsel %vm1557, %v2528, %v2630
      %v2783 = vsel %vm1557, %v2529, %v2632
      %v2786 = vsel %vm1557, %v2530, %v2634
      %v2789 = vsel %vm1557, %v2531, %v2636
      %v2792 = vsel %vm1557, %v2532, %v2638
      %v2795 = vsel %vm1557, %v2533, %v2640
      %v2798 = vsel %vm1557, %v2534, %v2642
      %v2801 = vsel %vm1557, %v2535, %v2644
      %v2804 = vsel %vm1557, %v2536, %v2646
      %v2807 = vsel %vm1557, %v2537, %v2648
      %v2810 = vsel %vm1557, %v2538, %v2650
      %v2812 = vsel %vm1606, %v2765, %v2732
      %v2814 = vsel %vm1606, %v2768, %v2734
      %v2816 = vsel %vm1606, %v2771, %v2736
      %v2818 = vsel %vm1606, %v2774, %v2738
      %v2820 = vsel %vm1606, %v2777, %v2740
      %v2822 = vsel %vm1606, %v2780, %v2742
      %v2824 = vsel %vm1606, %v2783, %v2744
      %v2826 = vsel %vm1606, %v2786, %v2746
      %v2828 = vsel %vm1606, %v2789, %v2748
      %v2830 = vsel %vm1606, %v2792, %v2750
      %v2832 = vsel %vm1606, %v2795, %v2752
      %v2834 = vsel %vm1606, %v2798, %v2754
      %v2836 = vsel %vm1606, %v2801, %v2756
      %v2838 = vsel %vm1606, %v2804, %v2758
      %v2840 = vsel %vm1606, %v2807, %v2760
      %v2842 = vsel %vm1606, %v2810, %v2762
      %v2843 = vld [vmem:[%s3] sm:$0xf]
      %v2844 = vld [vmem:[%s3 + $0x4] sm:$0x3]
      %s2845 = scalar_lea.vmem %s3, 8
      %v2846 = vld [vmem:[%s2845] sm:$0xf]
      %v2847 = vld [vmem:[%s2845 + $0x4] sm:$0x3]
      %v2850 = vunpack.c.l.b16 %v2846
      %v2851 = vunpack.c.l.b16 %v2847
      %v2852 = vpack.c.b16 %v2851, %v2850
      %v2853 = vsel %vm1649, %v2812, 0
      %v2855 = vsel %vm1649, %v2814, 0
      %v2857 = vsel %vm1649, %v2816, 0
      %v2859 = vsel %vm1649, %v2818, 0
      %v2861 = vsel %vm1649, %v2820, 0
      %v2863 = vsel %vm1649, %v2822, 0
      %v2865 = vsel %vm1649, %v2824, 0
      %v2867 = vsel %vm1649, %v2826, 0
      %v2869 = vsel %vm1649, %v2828, 0
      %v2871 = vsel %vm1649, %v2830, 0
      %v2873 = vsel %vm1649, %v2832, 0
      %v2875 = vsel %vm1649, %v2834, 0
      %v2877 = vsel %vm1649, %v2836, 0
      %v2879 = vsel %vm1649, %v2838, 0
      %v2881 = vsel %vm1649, %v2840, 0
      %v2883 = vsel %vm1649, %v2842, 0
      %v2886 = vsel %vm1682, %v2852, 0
      %2888 = vmatpush.bf16.msra.mxu0 0
      %2889 = vmatpush.bf16.msra.mxu0 0
      %2890 = vmatpush.bf16.msra.mxu0 0
      %2891 = vmatpush.bf16.msra.mxu0 0
      %2892 = vmatpush.bf16.msra.mxu0 0
      %2893 = vmatpush.bf16.msra.mxu0 0
      %2894 = vmatpush.bf16.msra.mxu0 0
      %2895 = vmatpush.bf16.msra.mxu0 %v2886
      %2896 = vmatmul.bf16.gmra.mxu0 %v2853
      %v2897 = vpop.f32.mrf.mxu0
      %v2898 = vadd.f32 0.0, %v2897
      %v2899 = vpop.f32.mrf.mxu0
      %v2900 = vadd.f32 0.0, %v2899
      %2901 = vmatmul.bf16.gmra.mxu0 %v2855
      %v2902 = vpop.f32.mrf.mxu0
      %v2903 = vadd.f32 0.0, %v2902
      %v2904 = vpop.f32.mrf.mxu0
      %v2905 = vadd.f32 0.0, %v2904
      %2906 = vmatmul.bf16.gmra.mxu0 %v2857
      %v2907 = vpop.f32.mrf.mxu0
      %v2908 = vadd.f32 0.0, %v2907
      %v2909 = vpop.f32.mrf.mxu0
      %v2910 = vadd.f32 0.0, %v2909
      %2911 = vmatmul.bf16.gmra.mxu0 %v2859
      %v2912 = vpop.f32.mrf.mxu0
      %v2913 = vadd.f32 0.0, %v2912
      %v2914 = vpop.f32.mrf.mxu0
      %v2915 = vadd.f32 0.0, %v2914
      %2916 = vmatmul.bf16.gmra.mxu0 %v2861
      %v2917 = vpop.f32.mrf.mxu0
      %v2918 = vadd.f32 0.0, %v2917
      %v2919 = vpop.f32.mrf.mxu0
      %v2920 = vadd.f32 0.0, %v2919
      %2921 = vmatmul.bf16.gmra.mxu0 %v2863
      %v2922 = vpop.f32.mrf.mxu0
      %v2923 = vadd.f32 0.0, %v2922
      %v2924 = vpop.f32.mrf.mxu0
      %v2925 = vadd.f32 0.0, %v2924
      %2926 = vmatmul.bf16.gmra.mxu0 %v2865
      %v2927 = vpop.f32.mrf.mxu0
      %v2928 = vadd.f32 0.0, %v2927
      %v2929 = vpop.f32.mrf.mxu0
      %v2930 = vadd.f32 0.0, %v2929
      %2931 = vmatmul.bf16.gmra.mxu0 %v2867
      %v2932 = vpop.f32.mrf.mxu0
      %v2933 = vadd.f32 0.0, %v2932
      %v2934 = vpop.f32.mrf.mxu0
      %v2935 = vadd.f32 0.0, %v2934
      %2936 = vmatmul.bf16.gmra.mxu0 %v2869
      %v2937 = vpop.f32.mrf.mxu0
      %v2938 = vadd.f32 0.0, %v2937
      %v2939 = vpop.f32.mrf.mxu0
      %v2940 = vadd.f32 0.0, %v2939
      %2941 = vmatmul.bf16.gmra.mxu0 %v2871
      %v2942 = vpop.f32.mrf.mxu0
      %v2943 = vadd.f32 0.0, %v2942
      %v2944 = vpop.f32.mrf.mxu0
      %v2945 = vadd.f32 0.0, %v2944
      %2946 = vmatmul.bf16.gmra.mxu0 %v2873
      %v2947 = vpop.f32.mrf.mxu0
      %v2948 = vadd.f32 0.0, %v2947
      %v2949 = vpop.f32.mrf.mxu0
      %v2950 = vadd.f32 0.0, %v2949
      %2951 = vmatmul.bf16.gmra.mxu0 %v2875
      %v2952 = vpop.f32.mrf.mxu0
      %v2953 = vadd.f32 0.0, %v2952
      %v2954 = vpop.f32.mrf.mxu0
      %v2955 = vadd.f32 0.0, %v2954
      %2956 = vmatmul.bf16.gmra.mxu0 %v2877
      %v2957 = vpop.f32.mrf.mxu0
      %v2958 = vadd.f32 0.0, %v2957
      %v2959 = vpop.f32.mrf.mxu0
      %v2960 = vadd.f32 0.0, %v2959
      %2961 = vmatmul.bf16.gmra.mxu0 %v2879
      %v2962 = vpop.f32.mrf.mxu0
      %v2963 = vadd.f32 0.0, %v2962
      %v2964 = vpop.f32.mrf.mxu0
      %v2965 = vadd.f32 0.0, %v2964
      %2966 = vmatmul.bf16.gmra.mxu0 %v2881
      %v2967 = vpop.f32.mrf.mxu0
      %v2968 = vadd.f32 0.0, %v2967
      %v2969 = vpop.f32.mrf.mxu0
      %v2970 = vadd.f32 0.0, %v2969
      %2971 = vmatmul.bf16.gmra.mxu0 %v2883
      %v2972 = vpop.f32.mrf.mxu0
      %v2973 = vadd.f32 0.0, %v2972
      %v2974 = vpop.f32.mrf.mxu0
      %v2975 = vadd.f32 0.0, %v2974
      %2976 = vdwg.mxu0
      %v2979 = vunpack.c.l.b16 %v2843
      %v2980 = vunpack.c.l.b16 %v2844
      %v2981 = vpack.c.b16 %v2980, %v2979
      %v2983 = vsel %vm1682, %v2981, 0
      %2985 = vmatpush.bf16.msra.mxu0 0
      %2986 = vmatpush.bf16.msra.mxu0 0
      %2987 = vmatpush.bf16.msra.mxu0 0
      %2988 = vmatpush.bf16.msra.mxu0 0
      %2989 = vmatpush.bf16.msra.mxu0 0
      %2990 = vmatpush.bf16.msra.mxu0 0
      %2991 = vmatpush.bf16.msra.mxu0 0
      %2992 = vmatpush.bf16.msra.mxu0 %v2983
      %2993 = vmatmul.bf16.gmra.mxu0 %v1781
      %v2994 = vpop.f32.mrf.mxu0
      %v2995 = vadd.f32 %v2898, %v2994
      %v2996 = vpop.f32.mrf.mxu0
      %v2997 = vadd.f32 %v2900, %v2996
      %2998 = vmatmul.bf16.gmra.mxu0 %v2853
      %v2999 = vpop.f32.mrf.mxu0
      %v3000 = vadd.f32 %v2903, %v2999
      %v3001 = vpop.f32.mrf.mxu0
      %v3002 = vadd.f32 %v2905, %v3001
      %3003 = vmatmul.bf16.gmra.mxu0 %v2855
      %v3004 = vpop.f32.mrf.mxu0
      %v3005 = vadd.f32 %v2908, %v3004
      %v3006 = vpop.f32.mrf.mxu0
      %v3007 = vadd.f32 %v2910, %v3006
      %3008 = vmatmul.bf16.gmra.mxu0 %v2857
      %v3009 = vpop.f32.mrf.mxu0
      %v3010 = vadd.f32 %v2913, %v3009
      %v3011 = vpop.f32.mrf.mxu0
      %v3012 = vadd.f32 %v2915, %v3011
      %3013 = vmatmul.bf16.gmra.mxu0 %v2859
      %v3014 = vpop.f32.mrf.mxu0
      %v3015 = vadd.f32 %v2918, %v3014
      %v3016 = vpop.f32.mrf.mxu0
      %v3017 = vadd.f32 %v2920, %v3016
      %3018 = vmatmul.bf16.gmra.mxu0 %v2861
      %v3019 = vpop.f32.mrf.mxu0
      %v3020 = vadd.f32 %v2923, %v3019
      %v3021 = vpop.f32.mrf.mxu0
      %v3022 = vadd.f32 %v2925, %v3021
      %3023 = vmatmul.bf16.gmra.mxu0 %v2863
      %v3024 = vpop.f32.mrf.mxu0
      %v3025 = vadd.f32 %v2928, %v3024
      %v3026 = vpop.f32.mrf.mxu0
      %v3027 = vadd.f32 %v2930, %v3026
      %3028 = vmatmul.bf16.gmra.mxu0 %v2865
      %v3029 = vpop.f32.mrf.mxu0
      %v3030 = vadd.f32 %v2933, %v3029
      %v3031 = vpop.f32.mrf.mxu0
      %v3032 = vadd.f32 %v2935, %v3031
      %3033 = vmatmul.bf16.gmra.mxu0 %v2867
      %v3034 = vpop.f32.mrf.mxu0
      %v3035 = vadd.f32 %v2938, %v3034
      %v3036 = vpop.f32.mrf.mxu0
      %v3037 = vadd.f32 %v2940, %v3036
      %3038 = vmatmul.bf16.gmra.mxu0 %v2869
      %v3039 = vpop.f32.mrf.mxu0
      %v3040 = vadd.f32 %v2943, %v3039
      %v3041 = vpop.f32.mrf.mxu0
      %v3042 = vadd.f32 %v2945, %v3041
      %3043 = vmatmul.bf16.gmra.mxu0 %v2871
      %v3044 = vpop.f32.mrf.mxu0
      %v3045 = vadd.f32 %v2948, %v3044
      %v3046 = vpop.f32.mrf.mxu0
      %v3047 = vadd.f32 %v2950, %v3046
      %3048 = vmatmul.bf16.gmra.mxu0 %v2873
      %v3049 = vpop.f32.mrf.mxu0
      %v3050 = vadd.f32 %v2953, %v3049
      %v3051 = vpop.f32.mrf.mxu0
      %v3052 = vadd.f32 %v2955, %v3051
      %3053 = vmatmul.bf16.gmra.mxu0 %v2875
      %v3054 = vpop.f32.mrf.mxu0
      %v3055 = vadd.f32 %v2958, %v3054
      %v3056 = vpop.f32.mrf.mxu0
      %v3057 = vadd.f32 %v2960, %v3056
      %3058 = vmatmul.bf16.gmra.mxu0 %v2877
      %v3059 = vpop.f32.mrf.mxu0
      %v3060 = vadd.f32 %v2963, %v3059
      %v3061 = vpop.f32.mrf.mxu0
      %v3062 = vadd.f32 %v2965, %v3061
      %3063 = vmatmul.bf16.gmra.mxu0 %v2879
      %v3064 = vpop.f32.mrf.mxu0
      %v3065 = vadd.f32 %v2968, %v3064
      %v3066 = vpop.f32.mrf.mxu0
      %v3067 = vadd.f32 %v2970, %v3066
      %3068 = vmatmul.bf16.gmra.mxu0 %v2881
      %v3069 = vpop.f32.mrf.mxu0
      %v3070 = vadd.f32 %v2973, %v3069
      %v3071 = vpop.f32.mrf.mxu0
      %v3072 = vadd.f32 %v2975, %v3071
      %3073 = vdwg.mxu0
      %s3074 = scalar_lea.vmem %s3, 16
      %v3075 = vld [vmem:[%s3074] sm:$0xf]
      %v3076 = vld [vmem:[%s3074 + $0x4] sm:$0x3]
      %v3079 = vunpack.c.l.b16 %v3075
      %v3080 = vunpack.c.l.b16 %v3076
      %v3081 = vpack.c.b16 %v3080, %v3079
      %v3083 = vsel %vm1682, %v3081, 0
      %3085 = vmatpush.bf16.msra.mxu0 0
      %3086 = vmatpush.bf16.msra.mxu0 0
      %3087 = vmatpush.bf16.msra.mxu0 0
      %3088 = vmatpush.bf16.msra.mxu0 0
      %3089 = vmatpush.bf16.msra.mxu0 0
      %3090 = vmatpush.bf16.msra.mxu0 0
      %3091 = vmatpush.bf16.msra.mxu0 0
      %3092 = vmatpush.bf16.msra.mxu0 %v3083
      %3093 = vmatmul.bf16.gmra.mxu0 %v2855
      %v3094 = vpop.f32.mrf.mxu0
      %v3095 = vadd.f32 0.0, %v3094
      %v3096 = vpop.f32.mrf.mxu0
      %v3097 = vadd.f32 0.0, %v3096
      %3098 = vmatmul.bf16.gmra.mxu0 %v2857
      %v3099 = vpop.f32.mrf.mxu0
      %v3100 = vadd.f32 0.0, %v3099
      %v3101 = vpop.f32.mrf.mxu0
      %v3102 = vadd.f32 0.0, %v3101
      %3103 = vmatmul.bf16.gmra.mxu0 %v2859
      %v3104 = vpop.f32.mrf.mxu0
      %v3105 = vadd.f32 0.0, %v3104
      %v3106 = vpop.f32.mrf.mxu0
      %v3107 = vadd.f32 0.0, %v3106
      %3108 = vmatmul.bf16.gmra.mxu0 %v2861
      %v3109 = vpop.f32.mrf.mxu0
      %v3110 = vadd.f32 0.0, %v3109
      %v3111 = vpop.f32.mrf.mxu0
      %v3112 = vadd.f32 0.0, %v3111
      %3113 = vmatmul.bf16.gmra.mxu0 %v2863
      %v3114 = vpop.f32.mrf.mxu0
      %v3115 = vadd.f32 0.0, %v3114
      %v3116 = vpop.f32.mrf.mxu0
      %v3117 = vadd.f32 0.0, %v3116
      %3118 = vmatmul.bf16.gmra.mxu0 %v2865
      %v3119 = vpop.f32.mrf.mxu0
      %v3120 = vadd.f32 0.0, %v3119
      %v3121 = vpop.f32.mrf.mxu0
      %v3122 = vadd.f32 0.0, %v3121
      %3123 = vmatmul.bf16.gmra.mxu0 %v2867
      %v3124 = vpop.f32.mrf.mxu0
      %v3125 = vadd.f32 0.0, %v3124
      %v3126 = vpop.f32.mrf.mxu0
      %v3127 = vadd.f32 0.0, %v3126
      %3128 = vmatmul.bf16.gmra.mxu0 %v2869
      %v3129 = vpop.f32.mrf.mxu0
      %v3130 = vadd.f32 0.0, %v3129
      %v3131 = vpop.f32.mrf.mxu0
      %v3132 = vadd.f32 0.0, %v3131
      %3133 = vmatmul.bf16.gmra.mxu0 %v2871
      %v3134 = vpop.f32.mrf.mxu0
      %v3135 = vadd.f32 0.0, %v3134
      %v3136 = vpop.f32.mrf.mxu0
      %v3137 = vadd.f32 0.0, %v3136
      %3138 = vmatmul.bf16.gmra.mxu0 %v2873
      %v3139 = vpop.f32.mrf.mxu0
      %v3140 = vadd.f32 0.0, %v3139
      %v3141 = vpop.f32.mrf.mxu0
      %v3142 = vadd.f32 0.0, %v3141
      %3143 = vmatmul.bf16.gmra.mxu0 %v2875
      %v3144 = vpop.f32.mrf.mxu0
      %v3145 = vadd.f32 0.0, %v3144
      %v3146 = vpop.f32.mrf.mxu0
      %v3147 = vadd.f32 0.0, %v3146
      %3148 = vmatmul.bf16.gmra.mxu0 %v2877
      %v3149 = vpop.f32.mrf.mxu0
      %v3150 = vadd.f32 0.0, %v3149
      %v3151 = vpop.f32.mrf.mxu0
      %v3152 = vadd.f32 0.0, %v3151
      %3153 = vmatmul.bf16.gmra.mxu0 %v2879
      %v3154 = vpop.f32.mrf.mxu0
      %v3155 = vadd.f32 0.0, %v3154
      %v3156 = vpop.f32.mrf.mxu0
      %v3157 = vadd.f32 0.0, %v3156
      %3158 = vmatmul.bf16.gmra.mxu0 %v2881
      %v3159 = vpop.f32.mrf.mxu0
      %v3160 = vadd.f32 0.0, %v3159
      %v3161 = vpop.f32.mrf.mxu0
      %v3162 = vadd.f32 0.0, %v3161
      %3163 = vmatmul.bf16.gmra.mxu0 %v2883
      %v3164 = vpop.f32.mrf.mxu0
      %v3165 = vadd.f32 0.0, %v3164
      %v3166 = vpop.f32.mrf.mxu0
      %v3167 = vadd.f32 0.0, %v3166
      %3168 = vmatmul.bf16.gmra.mxu0 %v1781
      %v3169 = vpop.f32.mrf.mxu0
      %v3170 = vadd.f32 0.0, %v3169
      %v3171 = vpop.f32.mrf.mxu0
      %v3172 = vadd.f32 0.0, %v3171
      %3173 = vdwg.mxu0
      %v3174 = vadd.f32 %v2995, %v3095
      %v3175 = vadd.f32 %v2997, %v3097
      %v3176 = vadd.f32 %v3000, %v3100
      %v3177 = vadd.f32 %v3002, %v3102
      %v3178 = vadd.f32 %v3005, %v3105
      %v3179 = vadd.f32 %v3007, %v3107
      %v3180 = vadd.f32 %v3010, %v3110
      %v3181 = vadd.f32 %v3012, %v3112
      %v3182 = vadd.f32 %v3015, %v3115
      %v3183 = vadd.f32 %v3017, %v3117
      %v3184 = vadd.f32 %v3020, %v3120
      %v3185 = vadd.f32 %v3022, %v3122
      %v3186 = vadd.f32 %v3025, %v3125
      %v3187 = vadd.f32 %v3027, %v3127
      %v3188 = vadd.f32 %v3030, %v3130
      %v3189 = vadd.f32 %v3032, %v3132
      %v3190 = vadd.f32 %v3035, %v3135
      %v3191 = vadd.f32 %v3037, %v3137
      %v3192 = vadd.f32 %v3040, %v3140
      %v3193 = vadd.f32 %v3042, %v3142
      %v3194 = vadd.f32 %v3045, %v3145
      %v3195 = vadd.f32 %v3047, %v3147
      %v3196 = vadd.f32 %v3050, %v3150
      %v3197 = vadd.f32 %v3052, %v3152
      %v3198 = vadd.f32 %v3055, %v3155
      %v3199 = vadd.f32 %v3057, %v3157
      %v3200 = vadd.f32 %v3060, %v3160
      %v3201 = vadd.f32 %v3062, %v3162
      %v3202 = vadd.f32 %v3065, %v3165
      %v3203 = vadd.f32 %v3067, %v3167
      %v3204 = vadd.f32 %v3070, %v3170
      %v3205 = vadd.f32 %v3072, %v3172
      %v3206 = vld [vmem:[%s4] sm:$0x1]
      %v3208 = vperm.slane %v3206, 0
      %v3210 = vadd.f32 %v3174, %v3208
      %v3211 = vadd.f32 %v3175, %v3208
      %v3212 = vadd.f32 %v3176, %v3208
      %v3213 = vadd.f32 %v3177, %v3208
      %v3214 = vadd.f32 %v3178, %v3208
      %v3215 = vadd.f32 %v3179, %v3208
      %v3216 = vadd.f32 %v3180, %v3208
      %v3217 = vadd.f32 %v3181, %v3208
      %v3218 = vadd.f32 %v3182, %v3208
      %v3219 = vadd.f32 %v3183, %v3208
      %v3220 = vadd.f32 %v3184, %v3208
      %v3221 = vadd.f32 %v3185, %v3208
      %v3222 = vadd.f32 %v3186, %v3208
      %v3223 = vadd.f32 %v3187, %v3208
      %v3224 = vadd.f32 %v3188, %v3208
      %v3225 = vadd.f32 %v3189, %v3208
      %v3226 = vadd.f32 %v3190, %v3208
      %v3227 = vadd.f32 %v3191, %v3208
      %v3228 = vadd.f32 %v3192, %v3208
      %v3229 = vadd.f32 %v3193, %v3208
      %v3230 = vadd.f32 %v3194, %v3208
      %v3231 = vadd.f32 %v3195, %v3208
      %v3232 = vadd.f32 %v3196, %v3208
      %v3233 = vadd.f32 %v3197, %v3208
      %v3234 = vadd.f32 %v3198, %v3208
      %v3235 = vadd.f32 %v3199, %v3208
      %v3236 = vadd.f32 %v3200, %v3208
      %v3237 = vadd.f32 %v3201, %v3208
      %v3238 = vadd.f32 %v3202, %v3208
      %v3239 = vadd.f32 %v3203, %v3208
      %v3240 = vadd.f32 %v3204, %v3208
      %v3241 = vadd.f32 %v3205, %v3208
      %v3242 = vadd.f32 %v3210, %v226
      %v3243 = vadd.f32 %v3211, %v227
      %v3244 = vadd.f32 %v3212, %v228
      %v3245 = vadd.f32 %v3213, %v229
      %v3246 = vadd.f32 %v3214, %v230
      %v3247 = vadd.f32 %v3215, %v231
      %v3248 = vadd.f32 %v3216, %v232
      %v3249 = vadd.f32 %v3217, %v233
      %v3250 = vadd.f32 %v3218, %v234
      %v3251 = vadd.f32 %v3219, %v235
      %v3252 = vadd.f32 %v3220, %v236
      %v3253 = vadd.f32 %v3221, %v237
      %v3254 = vadd.f32 %v3222, %v238
      %v3255 = vadd.f32 %v3223, %v239
      %v3256 = vadd.f32 %v3224, %v240
      %v3257 = vadd.f32 %v3225, %v241
      %v3258 = vadd.f32 %v3226, %v242
      %v3259 = vadd.f32 %v3227, %v243
      %v3260 = vadd.f32 %v3228, %v244
      %v3261 = vadd.f32 %v3229, %v245
      %v3262 = vadd.f32 %v3230, %v246
      %v3263 = vadd.f32 %v3231, %v247
      %v3264 = vadd.f32 %v3232, %v248
      %v3265 = vadd.f32 %v3233, %v249
      %v3266 = vadd.f32 %v3234, %v250
      %v3267 = vadd.f32 %v3235, %v251
      %v3268 = vadd.f32 %v3236, %v252
      %v3269 = vadd.f32 %v3237, %v253
      %v3270 = vadd.f32 %v3238, %v254
      %v3271 = vadd.f32 %v3239, %v255
      %v3272 = vadd.f32 %v3240, %v256
      %v3273 = vadd.f32 %v3241, %v257
      %v3274 = vmax.f32 %v3242, 0.0
      %v3275 = vmax.f32 %v3243, 0.0
      %v3276 = vmax.f32 %v3244, 0.0
      %v3277 = vmax.f32 %v3245, 0.0
      %v3278 = vmax.f32 %v3246, 0.0
      %v3279 = vmax.f32 %v3247, 0.0
      %v3280 = vmax.f32 %v3248, 0.0
      %v3281 = vmax.f32 %v3249, 0.0
      %v3282 = vmax.f32 %v3250, 0.0
      %v3283 = vmax.f32 %v3251, 0.0
      %v3284 = vmax.f32 %v3252, 0.0
      %v3285 = vmax.f32 %v3253, 0.0
      %v3286 = vmax.f32 %v3254, 0.0
      %v3287 = vmax.f32 %v3255, 0.0
      %v3288 = vmax.f32 %v3256, 0.0
      %v3289 = vmax.f32 %v3257, 0.0
      %v3290 = vmax.f32 %v3258, 0.0
      %v3291 = vmax.f32 %v3259, 0.0
      %v3292 = vmax.f32 %v3260, 0.0
      %v3293 = vmax.f32 %v3261, 0.0
      %v3294 = vmax.f32 %v3262, 0.0
      %v3295 = vmax.f32 %v3263, 0.0
      %v3296 = vmax.f32 %v3264, 0.0
      %v3297 = vmax.f32 %v3265, 0.0
      %v3298 = vmax.f32 %v3266, 0.0
      %v3299 = vmax.f32 %v3267, 0.0
      %v3300 = vmax.f32 %v3268, 0.0
      %v3301 = vmax.f32 %v3269, 0.0
      %v3302 = vmax.f32 %v3270, 0.0
      %v3303 = vmax.f32 %v3271, 0.0
      %v3304 = vmax.f32 %v3272, 0.0
      %v3305 = vmax.f32 %v3273, 0.0
      %3306 = vst.msk [vmem:[%s224] sm:$0xff] %vm1557, %v3274
      %3307 = vst.msk [vmem:[%s224 + $0x8] sm:$0xff] %vm1557, %v3275
      %3308 = vst.msk [vmem:[%s224 + $0x10] sm:$0xff] %vm1557, %v3276
      %3309 = vst.msk [vmem:[%s224 + $0x18] sm:$0xff] %vm1557, %v3277
      %3310 = vst.msk [vmem:[%s224 + $0x20] sm:$0xff] %vm1557, %v3278
      %3311 = vst.msk [vmem:[%s224 + $0x28] sm:$0xff] %vm1557, %v3279
      %3312 = vst.msk [vmem:[%s224 + $0x30] sm:$0xff] %vm1557, %v3280
      %3313 = vst.msk [vmem:[%s224 + $0x38] sm:$0xff] %vm1557, %v3281
      %3314 = vst.msk [vmem:[%s224 + $0x40] sm:$0xff] %vm1557, %v3282
      %3315 = vst.msk [vmem:[%s224 + $0x48] sm:$0xff] %vm1557, %v3283
      %3316 = vst.msk [vmem:[%s224 + $0x50] sm:$0xff] %vm1557, %v3284
      %3317 = vst.msk [vmem:[%s224 + $0x58] sm:$0xff] %vm1557, %v3285
      %3318 = vst.msk [vmem:[%s224 + $0x60] sm:$0xff] %vm1557, %v3286
      %3319 = vst.msk [vmem:[%s224 + $0x68] sm:$0xff] %vm1557, %v3287
      %3320 = vst.msk [vmem:[%s224 + $0x70] sm:$0xff] %vm1557, %v3288
      %3321 = vst.msk [vmem:[%s224 + $0x78] sm:$0xff] %vm1557, %v3289
      %3322 = vst.msk [vmem:[%s224 + $0x80] sm:$0xff] %vm1557, %v3290
      %3323 = vst.msk [vmem:[%s224 + $0x88] sm:$0xff] %vm1557, %v3291
      %3324 = vst.msk [vmem:[%s224 + $0x90] sm:$0xff] %vm1557, %v3292
      %3325 = vst.msk [vmem:[%s224 + $0x98] sm:$0xff] %vm1557, %v3293
      %3326 = vst.msk [vmem:[%s224 + $0xa0] sm:$0xff] %vm1557, %v3294
      %3327 = vst.msk [vmem:[%s224 + $0xa8] sm:$0xff] %vm1557, %v3295
      %3328 = vst.msk [vmem:[%s224 + $0xb0] sm:$0xff] %vm1557, %v3296
      %3329 = vst.msk [vmem:[%s224 + $0xb8] sm:$0xff] %vm1557, %v3297
      %3330 = vst.msk [vmem:[%s224 + $0xc0] sm:$0xff] %vm1557, %v3298
      %3331 = vst.msk [vmem:[%s224 + $0xc8] sm:$0xff] %vm1557, %v3299
      %3332 = vst.msk [vmem:[%s224 + $0xd0] sm:$0xff] %vm1557, %v3300
      %3333 = vst.msk [vmem:[%s224 + $0xd8] sm:$0xff] %vm1557, %v3301
      %3334 = vst.msk [vmem:[%s224 + $0xe0] sm:$0xff] %vm1557, %v3302
      %3335 = vst.msk [vmem:[%s224 + $0xe8] sm:$0xff] %vm1557, %v3303
      %3336 = vst.msk [vmem:[%s224 + $0xf0] sm:$0xff] %vm1557, %v3304
      %3337 = vst.msk [vmem:[%s224 + $0xf8] sm:$0xff] %vm1557, %v3305
      %p3338 = scmp.lt.s32.totalorder %s16, 1
      %s3339 = scalar_select %p3338, %s16, 1
      %s3340 = smul.addr %s3339, 32
      %s3341 = smul.addr %s3340, 8
      %s3342 = scalar_lea.vmem %s5, %s3341
      // Predicated region
      $region41: #{residual_block_nchw.1} parent=39 // pred_check
        %p3343 = pneg %p144
      $region42: #{residual_block_nchw.1} parent=39 // pred_check_branch
        %3345 = sbr.rel (%p3343) target = $region44
      $region43: #{residual_block_nchw.1} parent=39 // pred_region
        _
      $region44: #{residual_block_nchw.1} parent=39 // pred_fallthru
        _
    $region40: #{residual_block_nchw.1} parent=5 // pred_fallthru
      _
    %p3346 = scmp.le.s32.totalorder 2, %s11
    // Predicated region
    $region45: #{residual_block_nchw.1} parent=5 // pred_check
      %p3347 = pneg %p3346
    $region46: #{residual_block_nchw.1} parent=5 // pred_check_branch
      %3349 = sbr.rel (%p3347) target = $region48
    $region47: #{residual_block_nchw.1} parent=5 // pred_region
      %s3350 = ssub.s32 %s11, 2
      // Predicated region
      $region49: #{residual_block_nchw.1} parent=47 // pred_check
        %p3351 = pneg %p150
      $region50: #{residual_block_nchw.1} parent=47 // pred_check_branch
        %3353 = sbr.rel (%p3351) target = $region52
      $region51: #{residual_block_nchw.1} parent=47 // pred_region
        %p3354 = scmp.lt.s32.totalorder %s17, 1
        %s3355 = scalar_select %p3354, %s17, 1
        %s3356 = smul.addr %s3355, 32
        %s3357 = smul.addr %s3356, 8
        %s3358 = scalar_lea.vmem %s5, %s3357
      $region52: #{residual_block_nchw.1} parent=47 // pred_fallthru
        _
    $region48: #{residual_block_nchw.1} parent=5 // pred_fallthru
      _
  $region6: #{residual_block_nchw.1} parent=0 // loop_footer
    %s15 = sadd.s32 1, %s11
  $region7: #{residual_block_nchw.1} parent=0 // loop_footer_branch
    %10 = sbr.rel target = $region3
  $region8: #{residual_block_nchw.1} parent=0 // loop_exit
    _

</llo_original>
